<compile_context>
chip_gen: v5e
topology: v5e:2x2
jax: 0.10.0
libtpu: 0.0.40
codegen_flags: <defaults>
</compile_context>

<pallas_src>
import jax
import jax.numpy as jnp
from jax.experimental import pallas as pl
from jax.experimental.pallas import tpu as pltpu

# ----- model config (small, consistent with the module) -----
EMBED = 32
HEADS = 4
HEAD_DIM = EMBED // HEADS
FFN = 4 * EMBED          # forward_expansion = 4
NUM_LAYERS = 2
VOCAB = 50
MAX_LEN = 16
EPS = 1e-5               # nn.LayerNorm default


def _layernorm(x, gamma, beta):
    mu = jnp.mean(x, axis=-1, keepdims=True)
    var = jnp.mean((x - mu) ** 2, axis=-1, keepdims=True)   # biased variance (PyTorch)
    return (x - mu) * jax.lax.rsqrt(var + EPS) * gamma + beta


def transformer_block(x, mask, p):
    """x: (N, S, E) f32, mask: (N, S) f32 (1 keep / 0 mask) -> (N, S, E) f32."""
    N, S, E = x.shape
    NS = N * S
    HN = HEADS * N
    x2d = x.reshape(NS, E)
    scale = 1.0 / (float(EMBED) ** 0.5)

    # torch: masked_fill(-1e20) then divide by sqrt(E).  The scale is folded into the
    # Q weights below, so the additive key bias is pre-scaled too.  Built once here,
    # broadcast exactly once inside the kernel.
    bias = jnp.where(mask == 0.0, jnp.float32(-1e20) * scale, jnp.float32(0.0))  # (N, S)
    bias_hn = jnp.tile(bias, (HEADS, 1))                    # (H*N, S), row = h*N + n

    # Head-major weight layouts (wrapper-side layout plumbing, free under jit).
    wqkv = p["wqkv"]                                        # (E, 3E)
    wq_h = (wqkv[:, 0:E] * scale).reshape(E, HEADS, HEAD_DIM).transpose(1, 0, 2)  # (H,E,D)
    wk_h = wqkv[:, E:2 * E].reshape(E, HEADS, HEAD_DIM).transpose(1, 0, 2)        # (H,E,D)
    wv_h = wqkv[:, 2 * E:3 * E].reshape(E, HEADS, HEAD_DIM).transpose(1, 0, 2)    # (H,E,D)
    wo_h = p["wo"].reshape(HEADS, HEAD_DIM, E)                                    # (H,D,E)

    def kernel(x_ref, bias_ref,
               wq_ref, wk_ref, wv_ref, wo_ref, bo_ref,
               g1_ref, be1_ref,
               w1_ref, b1_ref, w2_ref, b2_ref,
               g2_ref, be2_ref,
               out_ref):
        xv = x_ref[...]                                   # (NS, E)

        # ----- per-head Q/K/V projections; heads on a leading WEIGHT axis so there
        #       are no non-lane-aligned activation slices anywhere -----
        def proj(w_ref):
            cols = [jnp.dot(xv, w_ref[h], preferred_element_type=jnp.float32)
                    for h in range(HEADS)]                # each (NS, D)
            # leading-dim concat + tile-aligned reshape (rows ordered (h, n, s))
            return jnp.concatenate(cols, axis=0).reshape(HN, S, HEAD_DIM)

        qb = proj(wq_ref)        # 1/sqrt(E) already folded into wq in the wrapper
        kb = proj(wk_ref)
        vb = proj(wv_ref)

        # ----- one batched energy matmul over all (head, batch) pairs -----
        energy = jnp.einsum('bqd,bkd->bqk', qb, kb,
                            preferred_element_type=jnp.float32)        # (HN, S, S)
        energy = energy + bias_ref[...][:, None, :]       # single key-bias broadcast

        # ----- ONE softmax for all heads/batches (one max / exp / sum / recip) -----
        m = jnp.max(energy, axis=-1, keepdims=True)
        e = jnp.exp(energy - m)
        attn = e * pl.reciprocal(jnp.sum(e, axis=-1, keepdims=True), approx=False)

        # ----- one batched attn @ v -----
        ctx = jnp.einsum('bqk,bkd->bqd', attn, vb,
                         preferred_element_type=jnp.float32)           # (HN, S, D)

        # ----- output projection: accumulate per-head partial products instead of a
        #       lane-axis concat; everything stays in registers (no VMEM scratch) -----
        ctx2 = ctx.reshape(HEADS, NS, HEAD_DIM)           # rows back to (n, s) order
        att = bo_ref[...]                                 # (1, E) broadcasts on add
        for h in range(HEADS):
            att = att + jnp.dot(ctx2[h], wo_ref[h],
                                preferred_element_type=jnp.float32)

        # ----- residual + layernorm 1 (dropout == identity) -----
        x1 = _layernorm(att + xv, g1_ref[...], be1_ref[...])

        # ----- feed forward -----
        hdn = jnp.dot(x1, w1_ref[...], preferred_element_type=jnp.float32) + b1_ref[...]
        hdn = jnp.maximum(hdn, 0.0)
        ff = jnp.dot(hdn, w2_ref[...], preferred_element_type=jnp.float32) + b2_ref[...]

        # ----- residual + layernorm 2 (dropout == identity) -----
        out_ref[...] = _layernorm(ff + x1, g2_ref[...], be2_ref[...])

    def full(arr):
        nd = arr.ndim
        return pl.BlockSpec(arr.shape, lambda i, _n=nd: (0,) * _n)

    args = (x2d, bias_hn, wq_h, wk_h, wv_h, wo_h, p["bo"],
            p["g1"], p["be1"], p["w1"], p["b1"], p["w2"], p["b2"],
            p["g2"], p["be2"])
    in_specs = [full(a) for a in args]
    out_specs = pl.BlockSpec((NS, E), lambda i: (0, 0))

    out2d = pl.pallas_call(
        kernel,
        out_shape=jax.ShapeDtypeStruct((NS, E), jnp.float32),
        grid=(1,),                                   # whole batch in one grid step
        in_specs=in_specs,
        out_specs=out_specs,
        compiler_params=pltpu.CompilerParams(dimension_semantics=("arbitrary",)),
    )(*args)
    return out2d.reshape(N, S, E)


# ----------------- parameter init (deterministic, synthetic) -----------------
def init_params(key):
    keys = jax.random.split(key, 2 + NUM_LAYERS)
    word_emb = jax.random.normal(keys[0], (VOCAB, EMBED), jnp.float32) * 0.02
    pos_emb = jax.random.normal(keys[1], (MAX_LEN, EMBED), jnp.float32) * 0.02

    def lin(k, fan_in, fan_out):
        return jax.random.normal(k, (fan_in, fan_out), jnp.float32) * (fan_in ** -0.5)

    layers = []
    for i in range(NUM_LAYERS):
        lk = jax.random.split(keys[2 + i], 9)
        wq = lin(lk[0], EMBED, EMBED)
        wk = lin(lk[1], EMBED, EMBED)
        wv = lin(lk[2], EMBED, EMBED)
        wo = lin(lk[3], EMBED, EMBED)
        layers.append(dict(
            wqkv=jnp.concatenate([wq, wk, wv], axis=1),   # (E, 3E) canonical storage
            wo=wo,                                        # (E, E)
            bo=jax.random.normal(lk[4], (1, EMBED), jnp.float32) * 0.01,
            g1=jnp.ones((1, EMBED), jnp.float32),
            be1=jnp.zeros((1, EMBED), jnp.float32),
            w1=lin(lk[5], EMBED, FFN),
            b1=jax.random.normal(lk[6], (1, FFN), jnp.float32) * 0.01,
            w2=lin(lk[7], FFN, EMBED),
            b2=jax.random.normal(lk[8], (1, EMBED), jnp.float32) * 0.01,
            g2=jnp.ones((1, EMBED), jnp.float32),
            be2=jnp.zeros((1, EMBED), jnp.float32),
        ))
    return word_emb, pos_emb, layers


# ----------------- Encoder forward (glue in plain JAX, jitted) -----------------
def encoder_forward(tokens, mask, word_emb, pos_emb, layers):
    N, S = tokens.shape
    positions = jnp.arange(S)
    inp = word_emb[tokens] + pos_emb[positions][None, :, :]   # embedding gather = glue
    # dropout == identity (eval mode).
    # The PyTorch loop runs `encoded = layer(input, input, input, mask)` with the
    # ORIGINAL `input` every time, so only the LAST layer's output is observable.
    # Skip the dead layers and run the block exactly once (identical output).
    return transformer_block(inp, mask, layers[-1])


# ----------------- pure-JAX reference for a sanity check -----------------
def _ref_block(x, mask, p):
    def mm(a, b):
        return jnp.einsum("...i,ij->...j", a, b, precision=jax.lax.Precision.HIGHEST)
    N, S, E = x.shape
    wqkv = p["wqkv"]
    q = mm(x, wqkv[:, 0:E]).reshape(N, S, HEADS, HEAD_DIM)
    k = mm(x, wqkv[:, E:2 * E]).reshape(N, S, HEADS, HEAD_DIM)
    v = mm(x, wqkv[:, 2 * E:3 * E]).reshape(N, S, HEADS, HEAD_DIM)
    energy = jnp.einsum("nqhd,nkhd->nhqk", q, k, precision=jax.lax.Precision.HIGHEST)
    energy = jnp.where(mask[:, None, None, :] == 0.0, -1e20, energy)
    attn = jax.nn.softmax(energy / (EMBED ** 0.5), axis=3)
    out = jnp.einsum("nhql,nlhd->nqhd", attn, v,
                     precision=jax.lax.Precision.HIGHEST).reshape(N, S, E)
    att = mm(out, p["wo"]) + p["bo"]
    x1 = _layernorm(att + x, p["g1"], p["be1"])
    ff = mm(jnp.maximum(mm(x1, p["w1"]) + p["b1"], 0.0), p["w2"]) + p["b2"]
    return _layernorm(ff + x1, p["g2"], p["be2"])


def _ref_encoder(tokens, mask, word_emb, pos_emb, layers):
    inp = word_emb[tokens] + pos_emb[jnp.arange(tokens.shape[1])][None]
    encoded = inp
    for p in layers:
        encoded = _ref_block(inp, mask, p)   # faithful to the PyTorch loop
    return encoded


if __name__ == "__main__":
    key = jax.random.PRNGKey(0)
    k_tok, k_par = jax.random.split(key)

    N, S = 2, 8
    tokens = jax.random.randint(k_tok, (N, S), 0, VOCAB, dtype=jnp.int32)
    mask = jnp.ones((N, S), jnp.float32)
    mask = mask.at[:, -1].set(0.0)   # mask the last key position to exercise masking

    word_emb, pos_emb, layers = init_params(k_par)

    fwd = jax.jit(encoder_forward)   # fuses embedding gather / weight re-layout / bias prep
    out = fwd(tokens, mask, word_emb, pos_emb, layers)
    out = jax.block_until_ready(out)

    ref = _ref_encoder(tokens, mask, word_emb, pos_emb, layers)
    assert out.shape == (N, S, EMBED)
    assert bool(jnp.all(jnp.isfinite(out)))
    assert bool(jnp.allclose(out, ref, atol=1e-2, rtol=1e-2)), "mismatch vs reference"

    print("KERNEL_OK")
</pallas_src>

<mosaic_0001>
module attributes {stable_mosaic.version = 11 : i64} {
  func.func @kernel(%arg0: i32, %arg1: memref<16x32xf32, #tpu.memory_space<vmem>>, %arg2: memref<8x8xf32, #tpu.memory_space<vmem>>, %arg3: memref<4x32x8xf32, #tpu.memory_space<vmem>>, %arg4: memref<4x32x8xf32, #tpu.memory_space<vmem>>, %arg5: memref<4x32x8xf32, #tpu.memory_space<vmem>>, %arg6: memref<4x8x32xf32, #tpu.memory_space<vmem>>, %arg7: memref<1x32xf32, #tpu.memory_space<vmem>>, %arg8: memref<1x32xf32, #tpu.memory_space<vmem>>, %arg9: memref<1x32xf32, #tpu.memory_space<vmem>>, %arg10: memref<32x128xf32, #tpu.memory_space<vmem>>, %arg11: memref<1x128xf32, #tpu.memory_space<vmem>>, %arg12: memref<128x32xf32, #tpu.memory_space<vmem>>, %arg13: memref<1x32xf32, #tpu.memory_space<vmem>>, %arg14: memref<1x32xf32, #tpu.memory_space<vmem>>, %arg15: memref<1x32xf32, #tpu.memory_space<vmem>>, %arg16: memref<16x32xf32, #tpu.memory_space<vmem>>) attributes {dimension_semantics = [#tpu.dimension_semantics<arbitrary>], iteration_bounds = array<i64: 1>, scalar_prefetch = 0 : i64, scratch_operands = 0 : i64, tpu.core_type = #tpu.core_type<tc>, window_params = [{pipeline_mode = #tpu.pipeline_mode<synchronous>, transform_indices = @transform_0, window_bounds = array<i64: 16, 32>}, {pipeline_mode = #tpu.pipeline_mode<synchronous>, transform_indices = @transform_1, window_bounds = array<i64: 8, 8>}, {pipeline_mode = #tpu.pipeline_mode<synchronous>, transform_indices = @transform_2, window_bounds = array<i64: 4, 32, 8>}, {pipeline_mode = #tpu.pipeline_mode<synchronous>, transform_indices = @transform_3, window_bounds = array<i64: 4, 32, 8>}, {pipeline_mode = #tpu.pipeline_mode<synchronous>, transform_indices = @transform_4, window_bounds = array<i64: 4, 32, 8>}, {pipeline_mode = #tpu.pipeline_mode<synchronous>, transform_indices = @transform_5, window_bounds = array<i64: 4, 8, 32>}, {pipeline_mode = #tpu.pipeline_mode<synchronous>, transform_indices = @transform_6, window_bounds = array<i64: 1, 32>}, {pipeline_mode = #tpu.pipeline_mode<synchronous>, transform_indices = @transform_7, window_bounds = array<i64: 1, 32>}, {pipeline_mode = #tpu.pipeline_mode<synchronous>, transform_indices = @transform_8, window_bounds = array<i64: 1, 32>}, {pipeline_mode = #tpu.pipeline_mode<synchronous>, transform_indices = @transform_9, window_bounds = array<i64: 32, 128>}, {pipeline_mode = #tpu.pipeline_mode<synchronous>, transform_indices = @transform_10, window_bounds = array<i64: 1, 128>}, {pipeline_mode = #tpu.pipeline_mode<synchronous>, transform_indices = @transform_11, window_bounds = array<i64: 128, 32>}, {pipeline_mode = #tpu.pipeline_mode<synchronous>, transform_indices = @transform_12, window_bounds = array<i64: 1, 32>}, {pipeline_mode = #tpu.pipeline_mode<synchronous>, transform_indices = @transform_13, window_bounds = array<i64: 1, 32>}, {pipeline_mode = #tpu.pipeline_mode<synchronous>, transform_indices = @transform_14, window_bounds = array<i64: 1, 32>}, {pipeline_mode = #tpu.pipeline_mode<synchronous>, transform_indices = @transform_15, window_bounds = array<i64: 16, 32>}]} {
    %c0 = arith.constant 0 : index
    %c0_0 = arith.constant 0 : index
    %0 = vector.load %arg1[%c0, %c0_0] : memref<16x32xf32, #tpu.memory_space<vmem>>, vector<16x32xf32>
    %c0_1 = arith.constant 0 : index
    %c0_2 = arith.constant 0 : index
    %c0_3 = arith.constant 0 : index
    %1 = vector.load %arg3[%c0_1, %c0_2, %c0_3] : memref<4x32x8xf32, #tpu.memory_space<vmem>>, vector<1x32x8xf32>
    %2 = vector.shape_cast %1 : vector<1x32x8xf32> to vector<32x8xf32>
    %cst = arith.constant dense<0.000000e+00> : vector<16x8xf32>
    %3 = tpu.matmul %0, %2, %cst {dimension_numbers = #tpu.dot_dimension_numbers<[1], [0], [0], [1], [0, 0, 1, 1], [], []>} : vector<16x32xf32>, vector<32x8xf32>, vector<16x8xf32> -> vector<16x8xf32>
    %c1 = arith.constant 1 : index
    %c0_4 = arith.constant 0 : index
    %c0_5 = arith.constant 0 : index
    %4 = vector.load %arg3[%c1, %c0_4, %c0_5] : memref<4x32x8xf32, #tpu.memory_space<vmem>>, vector<1x32x8xf32>
    %5 = vector.shape_cast %4 : vector<1x32x8xf32> to vector<32x8xf32>
    %cst_6 = arith.constant dense<0.000000e+00> : vector<16x8xf32>
    %6 = tpu.matmul %0, %5, %cst_6 {dimension_numbers = #tpu.dot_dimension_numbers<[1], [0], [0], [1], [0, 0, 1, 1], [], []>} : vector<16x32xf32>, vector<32x8xf32>, vector<16x8xf32> -> vector<16x8xf32>
    %c2 = arith.constant 2 : index
    %c0_7 = arith.constant 0 : index
    %c0_8 = arith.constant 0 : index
    %7 = vector.load %arg3[%c2, %c0_7, %c0_8] : memref<4x32x8xf32, #tpu.memory_space<vmem>>, vector<1x32x8xf32>
    %8 = vector.shape_cast %7 : vector<1x32x8xf32> to vector<32x8xf32>
    %cst_9 = arith.constant dense<0.000000e+00> : vector<16x8xf32>
    %9 = tpu.matmul %0, %8, %cst_9 {dimension_numbers = #tpu.dot_dimension_numbers<[1], [0], [0], [1], [0, 0, 1, 1], [], []>} : vector<16x32xf32>, vector<32x8xf32>, vector<16x8xf32> -> vector<16x8xf32>
    %c3 = arith.constant 3 : index
    %c0_10 = arith.constant 0 : index
    %c0_11 = arith.constant 0 : index
    %10 = vector.load %arg3[%c3, %c0_10, %c0_11] : memref<4x32x8xf32, #tpu.memory_space<vmem>>, vector<1x32x8xf32>
    %11 = vector.shape_cast %10 : vector<1x32x8xf32> to vector<32x8xf32>
    %cst_12 = arith.constant dense<0.000000e+00> : vector<16x8xf32>
    %12 = tpu.matmul %0, %11, %cst_12 {dimension_numbers = #tpu.dot_dimension_numbers<[1], [0], [0], [1], [0, 0, 1, 1], [], []>} : vector<16x32xf32>, vector<32x8xf32>, vector<16x8xf32> -> vector<16x8xf32>
    %13 = tpu.concatenate %3, %6, %9, %12 in 0 : vector<16x8xf32>, vector<16x8xf32>, vector<16x8xf32>, vector<16x8xf32> -> vector<64x8xf32>
    %14 = vector.shape_cast %13 : vector<64x8xf32> to vector<8x8x8xf32>
    %c0_13 = arith.constant 0 : index
    %c0_14 = arith.constant 0 : index
    %c0_15 = arith.constant 0 : index
    %15 = vector.load %arg4[%c0_13, %c0_14, %c0_15] : memref<4x32x8xf32, #tpu.memory_space<vmem>>, vector<1x32x8xf32>
    %16 = vector.shape_cast %15 : vector<1x32x8xf32> to vector<32x8xf32>
    %cst_16 = arith.constant dense<0.000000e+00> : vector<16x8xf32>
    %17 = tpu.matmul %0, %16, %cst_16 {dimension_numbers = #tpu.dot_dimension_numbers<[1], [0], [0], [1], [0, 0, 1, 1], [], []>} : vector<16x32xf32>, vector<32x8xf32>, vector<16x8xf32> -> vector<16x8xf32>
    %c1_17 = arith.constant 1 : index
    %c0_18 = arith.constant 0 : index
    %c0_19 = arith.constant 0 : index
    %18 = vector.load %arg4[%c1_17, %c0_18, %c0_19] : memref<4x32x8xf32, #tpu.memory_space<vmem>>, vector<1x32x8xf32>
    %19 = vector.shape_cast %18 : vector<1x32x8xf32> to vector<32x8xf32>
    %cst_20 = arith.constant dense<0.000000e+00> : vector<16x8xf32>
    %20 = tpu.matmul %0, %19, %cst_20 {dimension_numbers = #tpu.dot_dimension_numbers<[1], [0], [0], [1], [0, 0, 1, 1], [], []>} : vector<16x32xf32>, vector<32x8xf32>, vector<16x8xf32> -> vector<16x8xf32>
    %c2_21 = arith.constant 2 : index
    %c0_22 = arith.constant 0 : index
    %c0_23 = arith.constant 0 : index
    %21 = vector.load %arg4[%c2_21, %c0_22, %c0_23] : memref<4x32x8xf32, #tpu.memory_space<vmem>>, vector<1x32x8xf32>
    %22 = vector.shape_cast %21 : vector<1x32x8xf32> to vector<32x8xf32>
    %cst_24 = arith.constant dense<0.000000e+00> : vector<16x8xf32>
    %23 = tpu.matmul %0, %22, %cst_24 {dimension_numbers = #tpu.dot_dimension_numbers<[1], [0], [0], [1], [0, 0, 1, 1], [], []>} : vector<16x32xf32>, vector<32x8xf32>, vector<16x8xf32> -> vector<16x8xf32>
    %c3_25 = arith.constant 3 : index
    %c0_26 = arith.constant 0 : index
    %c0_27 = arith.constant 0 : index
    %24 = vector.load %arg4[%c3_25, %c0_26, %c0_27] : memref<4x32x8xf32, #tpu.memory_space<vmem>>, vector<1x32x8xf32>
    %25 = vector.shape_cast %24 : vector<1x32x8xf32> to vector<32x8xf32>
    %cst_28 = arith.constant dense<0.000000e+00> : vector<16x8xf32>
    %26 = tpu.matmul %0, %25, %cst_28 {dimension_numbers = #tpu.dot_dimension_numbers<[1], [0], [0], [1], [0, 0, 1, 1], [], []>} : vector<16x32xf32>, vector<32x8xf32>, vector<16x8xf32> -> vector<16x8xf32>
    %27 = tpu.concatenate %17, %20, %23, %26 in 0 : vector<16x8xf32>, vector<16x8xf32>, vector<16x8xf32>, vector<16x8xf32> -> vector<64x8xf32>
    %28 = vector.shape_cast %27 : vector<64x8xf32> to vector<8x8x8xf32>
    %c0_29 = arith.constant 0 : index
    %c0_30 = arith.constant 0 : index
    %c0_31 = arith.constant 0 : index
    %29 = vector.load %arg5[%c0_29, %c0_30, %c0_31] : memref<4x32x8xf32, #tpu.memory_space<vmem>>, vector<1x32x8xf32>
    %30 = vector.shape_cast %29 : vector<1x32x8xf32> to vector<32x8xf32>
    %cst_32 = arith.constant dense<0.000000e+00> : vector<16x8xf32>
    %31 = tpu.matmul %0, %30, %cst_32 {dimension_numbers = #tpu.dot_dimension_numbers<[1], [0], [0], [1], [0, 0, 1, 1], [], []>} : vector<16x32xf32>, vector<32x8xf32>, vector<16x8xf32> -> vector<16x8xf32>
    %c1_33 = arith.constant 1 : index
    %c0_34 = arith.constant 0 : index
    %c0_35 = arith.constant 0 : index
    %32 = vector.load %arg5[%c1_33, %c0_34, %c0_35] : memref<4x32x8xf32, #tpu.memory_space<vmem>>, vector<1x32x8xf32>
    %33 = vector.shape_cast %32 : vector<1x32x8xf32> to vector<32x8xf32>
    %cst_36 = arith.constant dense<0.000000e+00> : vector<16x8xf32>
    %34 = tpu.matmul %0, %33, %cst_36 {dimension_numbers = #tpu.dot_dimension_numbers<[1], [0], [0], [1], [0, 0, 1, 1], [], []>} : vector<16x32xf32>, vector<32x8xf32>, vector<16x8xf32> -> vector<16x8xf32>
    %c2_37 = arith.constant 2 : index
    %c0_38 = arith.constant 0 : index
    %c0_39 = arith.constant 0 : index
    %35 = vector.load %arg5[%c2_37, %c0_38, %c0_39] : memref<4x32x8xf32, #tpu.memory_space<vmem>>, vector<1x32x8xf32>
    %36 = vector.shape_cast %35 : vector<1x32x8xf32> to vector<32x8xf32>
    %cst_40 = arith.constant dense<0.000000e+00> : vector<16x8xf32>
    %37 = tpu.matmul %0, %36, %cst_40 {dimension_numbers = #tpu.dot_dimension_numbers<[1], [0], [0], [1], [0, 0, 1, 1], [], []>} : vector<16x32xf32>, vector<32x8xf32>, vector<16x8xf32> -> vector<16x8xf32>
    %c3_41 = arith.constant 3 : index
    %c0_42 = arith.constant 0 : index
    %c0_43 = arith.constant 0 : index
    %38 = vector.load %arg5[%c3_41, %c0_42, %c0_43] : memref<4x32x8xf32, #tpu.memory_space<vmem>>, vector<1x32x8xf32>
    %39 = vector.shape_cast %38 : vector<1x32x8xf32> to vector<32x8xf32>
    %cst_44 = arith.constant dense<0.000000e+00> : vector<16x8xf32>
    %40 = tpu.matmul %0, %39, %cst_44 {dimension_numbers = #tpu.dot_dimension_numbers<[1], [0], [0], [1], [0, 0, 1, 1], [], []>} : vector<16x32xf32>, vector<32x8xf32>, vector<16x8xf32> -> vector<16x8xf32>
    %41 = tpu.concatenate %31, %34, %37, %40 in 0 : vector<16x8xf32>, vector<16x8xf32>, vector<16x8xf32>, vector<16x8xf32> -> vector<64x8xf32>
    %42 = vector.shape_cast %41 : vector<64x8xf32> to vector<8x8x8xf32>
    "tpu.trace_start"() <{level = 10 : i32, message = "bqd,bkd->bqk"}> : () -> ()
    %cst_45 = arith.constant dense<0.000000e+00> : vector<8x8x8xf32>
    %43 = tpu.matmul %14, %28, %cst_45 {dimension_numbers = #tpu.dot_dimension_numbers<[2], [2], [1], [1], [0, 0, 0, 1, 1, 1], [0], [0]>} : vector<8x8x8xf32>, vector<8x8x8xf32>, vector<8x8x8xf32> -> vector<8x8x8xf32>
    "tpu.trace_stop"() : () -> ()
    %c0_46 = arith.constant 0 : index
    %c0_47 = arith.constant 0 : index
    %44 = vector.load %arg2[%c0_46, %c0_47] : memref<8x8xf32, #tpu.memory_space<vmem>>, vector<8x8xf32>
    %45 = vector.shape_cast %44 : vector<8x8xf32> to vector<8x1x8xf32>
    %46 = vector.broadcast %45 : vector<8x1x8xf32> to vector<8x8x8xf32>
    %47 = arith.addf %43, %46 : vector<8x8x8xf32>
    %cst_48 = arith.constant dense<0xFF800000> : vector<8x8xf32>
    %48 = vector.multi_reduction <maximumf>, %47, %cst_48 [2] : vector<8x8x8xf32> to vector<8x8xf32>
    %49 = vector.shape_cast %48 : vector<8x8xf32> to vector<8x8x1xf32>
    %50 = vector.broadcast %49 : vector<8x8x1xf32> to vector<8x8x8xf32>
    %51 = arith.subf %47, %50 : vector<8x8x8xf32>
    %52 = math.exp %51 : vector<8x8x8xf32>
    %cst_49 = arith.constant dense<0.000000e+00> : vector<8x8xf32>
    %53 = vector.multi_reduction <add>, %52, %cst_49 [2] : vector<8x8x8xf32> to vector<8x8xf32>
    %54 = vector.shape_cast %53 : vector<8x8xf32> to vector<8x8x1xf32>
    %55 = tpu.reciprocal %54 : vector<8x8x1xf32> -> vector<8x8x1xf32>
    %56 = vector.broadcast %55 : vector<8x8x1xf32> to vector<8x8x8xf32>
    %57 = arith.mulf %52, %56 : vector<8x8x8xf32>
    "tpu.trace_start"() <{level = 10 : i32, message = "bqk,bkd->bqd"}> : () -> ()
    %cst_50 = arith.constant dense<0.000000e+00> : vector<8x8x8xf32>
    %58 = tpu.matmul %57, %42, %cst_50 {dimension_numbers = #tpu.dot_dimension_numbers<[2], [1], [1], [2], [0, 0, 0, 1, 1, 2], [0], [0]>} : vector<8x8x8xf32>, vector<8x8x8xf32>, vector<8x8x8xf32> -> vector<8x8x8xf32>
    "tpu.trace_stop"() : () -> ()
    %59 = vector.shape_cast %58 : vector<8x8x8xf32> to vector<4x16x8xf32>
    %c0_51 = arith.constant 0 : index
    %c0_52 = arith.constant 0 : index
    %60 = vector.load %arg7[%c0_51, %c0_52] : memref<1x32xf32, #tpu.memory_space<vmem>>, vector<1x32xf32>
    %61 = vector.extract_strided_slice %59 {offsets = [0, 0, 0], sizes = [1, 16, 8], strides = [1, 1, 1]} : vector<4x16x8xf32> to vector<1x16x8xf32>
    %62 = vector.shape_cast %61 : vector<1x16x8xf32> to vector<16x8xf32>
    %c0_53 = arith.constant 0 : index
    %c0_54 = arith.constant 0 : index
    %c0_55 = arith.constant 0 : index
    %63 = vector.load %arg6[%c0_53, %c0_54, %c0_55] : memref<4x8x32xf32, #tpu.memory_space<vmem>>, vector<1x8x32xf32>
    %64 = vector.shape_cast %63 : vector<1x8x32xf32> to vector<8x32xf32>
    %cst_56 = arith.constant dense<0.000000e+00> : vector<16x32xf32>
    %65 = tpu.matmul %62, %64, %cst_56 {dimension_numbers = #tpu.dot_dimension_numbers<[1], [0], [0], [1], [0, 0, 1, 1], [], []>} : vector<16x8xf32>, vector<8x32xf32>, vector<16x32xf32> -> vector<16x32xf32>
    %66 = vector.broadcast %60 : vector<1x32xf32> to vector<16x32xf32>
    %67 = arith.addf %66, %65 : vector<16x32xf32>
    %68 = vector.extract_strided_slice %59 {offsets = [1, 0, 0], sizes = [1, 16, 8], strides = [1, 1, 1]} : vector<4x16x8xf32> to vector<1x16x8xf32>
    %69 = vector.shape_cast %68 : vector<1x16x8xf32> to vector<16x8xf32>
    %c1_57 = arith.constant 1 : index
    %c0_58 = arith.constant 0 : index
    %c0_59 = arith.constant 0 : index
    %70 = vector.load %arg6[%c1_57, %c0_58, %c0_59] : memref<4x8x32xf32, #tpu.memory_space<vmem>>, vector<1x8x32xf32>
    %71 = vector.shape_cast %70 : vector<1x8x32xf32> to vector<8x32xf32>
    %cst_60 = arith.constant dense<0.000000e+00> : vector<16x32xf32>
    %72 = tpu.matmul %69, %71, %cst_60 {dimension_numbers = #tpu.dot_dimension_numbers<[1], [0], [0], [1], [0, 0, 1, 1], [], []>} : vector<16x8xf32>, vector<8x32xf32>, vector<16x32xf32> -> vector<16x32xf32>
    %73 = arith.addf %67, %72 : vector<16x32xf32>
    %74 = vector.extract_strided_slice %59 {offsets = [2, 0, 0], sizes = [1, 16, 8], strides = [1, 1, 1]} : vector<4x16x8xf32> to vector<1x16x8xf32>
    %75 = vector.shape_cast %74 : vector<1x16x8xf32> to vector<16x8xf32>
    %c2_61 = arith.constant 2 : index
    %c0_62 = arith.constant 0 : index
    %c0_63 = arith.constant 0 : index
    %76 = vector.load %arg6[%c2_61, %c0_62, %c0_63] : memref<4x8x32xf32, #tpu.memory_space<vmem>>, vector<1x8x32xf32>
    %77 = vector.shape_cast %76 : vector<1x8x32xf32> to vector<8x32xf32>
    %cst_64 = arith.constant dense<0.000000e+00> : vector<16x32xf32>
    %78 = tpu.matmul %75, %77, %cst_64 {dimension_numbers = #tpu.dot_dimension_numbers<[1], [0], [0], [1], [0, 0, 1, 1], [], []>} : vector<16x8xf32>, vector<8x32xf32>, vector<16x32xf32> -> vector<16x32xf32>
    %79 = arith.addf %73, %78 : vector<16x32xf32>
    %80 = vector.extract_strided_slice %59 {offsets = [3, 0, 0], sizes = [1, 16, 8], strides = [1, 1, 1]} : vector<4x16x8xf32> to vector<1x16x8xf32>
    %81 = vector.shape_cast %80 : vector<1x16x8xf32> to vector<16x8xf32>
    %c3_65 = arith.constant 3 : index
    %c0_66 = arith.constant 0 : index
    %c0_67 = arith.constant 0 : index
    %82 = vector.load %arg6[%c3_65, %c0_66, %c0_67] : memref<4x8x32xf32, #tpu.memory_space<vmem>>, vector<1x8x32xf32>
    %83 = vector.shape_cast %82 : vector<1x8x32xf32> to vector<8x32xf32>
    %cst_68 = arith.constant dense<0.000000e+00> : vector<16x32xf32>
    %84 = tpu.matmul %81, %83, %cst_68 {dimension_numbers = #tpu.dot_dimension_numbers<[1], [0], [0], [1], [0, 0, 1, 1], [], []>} : vector<16x8xf32>, vector<8x32xf32>, vector<16x32xf32> -> vector<16x32xf32>
    %85 = arith.addf %79, %84 : vector<16x32xf32>
    %86 = arith.addf %85, %0 : vector<16x32xf32>
    %c0_69 = arith.constant 0 : index
    %c0_70 = arith.constant 0 : index
    %87 = vector.load %arg8[%c0_69, %c0_70] : memref<1x32xf32, #tpu.memory_space<vmem>>, vector<1x32xf32>
    %c0_71 = arith.constant 0 : index
    %c0_72 = arith.constant 0 : index
    %88 = vector.load %arg9[%c0_71, %c0_72] : memref<1x32xf32, #tpu.memory_space<vmem>>, vector<1x32xf32>
    %cst_73 = arith.constant dense<0.000000e+00> : vector<16xf32>
    %89 = vector.multi_reduction <add>, %86, %cst_73 [1] : vector<16x32xf32> to vector<16xf32>
    %90 = vector.shape_cast %89 : vector<16xf32> to vector<16x1xf32>
    %cst_74 = arith.constant 3.200000e+01 : f32
    %91 = vector.broadcast %cst_74 : f32 to vector<16x1xf32>
    %92 = arith.divf %90, %91 : vector<16x1xf32>
    %93 = vector.broadcast %92 : vector<16x1xf32> to vector<16x32xf32>
    %94 = arith.subf %86, %93 : vector<16x32xf32>
    %95 = arith.mulf %94, %94 : vector<16x32xf32>
    %cst_75 = arith.constant dense<0.000000e+00> : vector<16xf32>
    %96 = vector.multi_reduction <add>, %95, %cst_75 [1] : vector<16x32xf32> to vector<16xf32>
    %97 = vector.shape_cast %96 : vector<16xf32> to vector<16x1xf32>
    %cst_76 = arith.constant 3.200000e+01 : f32
    %98 = vector.broadcast %cst_76 : f32 to vector<16x1xf32>
    %99 = arith.divf %97, %98 : vector<16x1xf32>
    %100 = vector.broadcast %92 : vector<16x1xf32> to vector<16x32xf32>
    %101 = arith.subf %86, %100 : vector<16x32xf32>
    %cst_77 = arith.constant 9.99999974E-6 : f32
    %102 = vector.broadcast %cst_77 : f32 to vector<16x1xf32>
    %103 = arith.addf %99, %102 : vector<16x1xf32>
    %104 = math.rsqrt %103 : vector<16x1xf32>
    %105 = vector.broadcast %104 : vector<16x1xf32> to vector<16x32xf32>
    %106 = arith.mulf %101, %105 : vector<16x32xf32>
    %107 = vector.broadcast %87 : vector<1x32xf32> to vector<16x32xf32>
    %108 = arith.mulf %106, %107 : vector<16x32xf32>
    %109 = vector.broadcast %88 : vector<1x32xf32> to vector<16x32xf32>
    %110 = arith.addf %108, %109 : vector<16x32xf32>
    %c0_78 = arith.constant 0 : index
    %c0_79 = arith.constant 0 : index
    %111 = vector.load %arg10[%c0_78, %c0_79] : memref<32x128xf32, #tpu.memory_space<vmem>>, vector<32x128xf32>
    %cst_80 = arith.constant dense<0.000000e+00> : vector<16x128xf32>
    %112 = tpu.matmul %110, %111, %cst_80 {dimension_numbers = #tpu.dot_dimension_numbers<[1], [0], [0], [1], [0, 0, 1, 1], [], []>} : vector<16x32xf32>, vector<32x128xf32>, vector<16x128xf32> -> vector<16x128xf32>
    %c0_81 = arith.constant 0 : index
    %c0_82 = arith.constant 0 : index
    %113 = vector.load %arg11[%c0_81, %c0_82] : memref<1x128xf32, #tpu.memory_space<vmem>>, vector<1x128xf32>
    %114 = vector.broadcast %113 : vector<1x128xf32> to vector<16x128xf32>
    %115 = arith.addf %112, %114 : vector<16x128xf32>
    %cst_83 = arith.constant 0.000000e+00 : f32
    %116 = vector.broadcast %cst_83 : f32 to vector<16x128xf32>
    %117 = arith.maximumf %115, %116 : vector<16x128xf32>
    %c0_84 = arith.constant 0 : index
    %c0_85 = arith.constant 0 : index
    %118 = vector.load %arg12[%c0_84, %c0_85] : memref<128x32xf32, #tpu.memory_space<vmem>>, vector<128x32xf32>
    %cst_86 = arith.constant dense<0.000000e+00> : vector<16x32xf32>
    %119 = tpu.matmul %117, %118, %cst_86 {dimension_numbers = #tpu.dot_dimension_numbers<[1], [0], [0], [1], [0, 0, 1, 1], [], []>} : vector<16x128xf32>, vector<128x32xf32>, vector<16x32xf32> -> vector<16x32xf32>
    %c0_87 = arith.constant 0 : index
    %c0_88 = arith.constant 0 : index
    %120 = vector.load %arg13[%c0_87, %c0_88] : memref<1x32xf32, #tpu.memory_space<vmem>>, vector<1x32xf32>
    %121 = vector.broadcast %120 : vector<1x32xf32> to vector<16x32xf32>
    %122 = arith.addf %119, %121 : vector<16x32xf32>
    %123 = arith.addf %122, %110 : vector<16x32xf32>
    %c0_89 = arith.constant 0 : index
    %c0_90 = arith.constant 0 : index
    %124 = vector.load %arg14[%c0_89, %c0_90] : memref<1x32xf32, #tpu.memory_space<vmem>>, vector<1x32xf32>
    %c0_91 = arith.constant 0 : index
    %c0_92 = arith.constant 0 : index
    %125 = vector.load %arg15[%c0_91, %c0_92] : memref<1x32xf32, #tpu.memory_space<vmem>>, vector<1x32xf32>
    %cst_93 = arith.constant dense<0.000000e+00> : vector<16xf32>
    %126 = vector.multi_reduction <add>, %123, %cst_93 [1] : vector<16x32xf32> to vector<16xf32>
    %127 = vector.shape_cast %126 : vector<16xf32> to vector<16x1xf32>
    %cst_94 = arith.constant 3.200000e+01 : f32
    %128 = vector.broadcast %cst_94 : f32 to vector<16x1xf32>
    %129 = arith.divf %127, %128 : vector<16x1xf32>
    %130 = vector.broadcast %129 : vector<16x1xf32> to vector<16x32xf32>
    %131 = arith.subf %123, %130 : vector<16x32xf32>
    %132 = arith.mulf %131, %131 : vector<16x32xf32>
    %cst_95 = arith.constant dense<0.000000e+00> : vector<16xf32>
    %133 = vector.multi_reduction <add>, %132, %cst_95 [1] : vector<16x32xf32> to vector<16xf32>
    %134 = vector.shape_cast %133 : vector<16xf32> to vector<16x1xf32>
    %cst_96 = arith.constant 3.200000e+01 : f32
    %135 = vector.broadcast %cst_96 : f32 to vector<16x1xf32>
    %136 = arith.divf %134, %135 : vector<16x1xf32>
    %137 = vector.broadcast %129 : vector<16x1xf32> to vector<16x32xf32>
    %138 = arith.subf %123, %137 : vector<16x32xf32>
    %cst_97 = arith.constant 9.99999974E-6 : f32
    %139 = vector.broadcast %cst_97 : f32 to vector<16x1xf32>
    %140 = arith.addf %136, %139 : vector<16x1xf32>
    %141 = math.rsqrt %140 : vector<16x1xf32>
    %142 = vector.broadcast %141 : vector<16x1xf32> to vector<16x32xf32>
    %143 = arith.mulf %138, %142 : vector<16x32xf32>
    %144 = vector.broadcast %124 : vector<1x32xf32> to vector<16x32xf32>
    %145 = arith.mulf %143, %144 : vector<16x32xf32>
    %146 = vector.broadcast %125 : vector<1x32xf32> to vector<16x32xf32>
    %147 = arith.addf %145, %146 : vector<16x32xf32>
    %c0_98 = arith.constant 0 : index
    %c0_99 = arith.constant 0 : index
    %148 = vector.load %arg16[%c0_98, %c0_99] : memref<16x32xf32, #tpu.memory_space<vmem>>, vector<16x32xf32>
    tpu.vector_store %arg16[%c0_98, %c0_99], %147 {strides = array<i32>} : memref<16x32xf32, #tpu.memory_space<vmem>>, vector<16x32xf32>,
    return
  }
  func.func @transform_0(%arg0: i32) -> (i32, i32) {
    %c0_i32 = arith.constant 0 : i32
    %c0_i32_0 = arith.constant 0 : i32
    %c0_i32_1 = arith.constant 0 : i32
    return %c0_i32, %c0_i32_0 : i32, i32
  }
  func.func @transform_1(%arg0: i32) -> (i32, i32) {
    %c0_i32 = arith.constant 0 : i32
    %c0_i32_0 = arith.constant 0 : i32
    %c0_i32_1 = arith.constant 0 : i32
    return %c0_i32, %c0_i32_0 : i32, i32
  }
  func.func @transform_2(%arg0: i32) -> (i32, i32, i32) {
    %c0_i32 = arith.constant 0 : i32
    %c0_i32_0 = arith.constant 0 : i32
    %c0_i32_1 = arith.constant 0 : i32
    %c0_i32_2 = arith.constant 0 : i32
    return %c0_i32, %c0_i32_0, %c0_i32_1 : i32, i32, i32
  }
  func.func @transform_3(%arg0: i32) -> (i32, i32, i32) {
    %c0_i32 = arith.constant 0 : i32
    %c0_i32_0 = arith.constant 0 : i32
    %c0_i32_1 = arith.constant 0 : i32
    %c0_i32_2 = arith.constant 0 : i32
    return %c0_i32, %c0_i32_0, %c0_i32_1 : i32, i32, i32
  }
  func.func @transform_4(%arg0: i32) -> (i32, i32, i32) {
    %c0_i32 = arith.constant 0 : i32
    %c0_i32_0 = arith.constant 0 : i32
    %c0_i32_1 = arith.constant 0 : i32
    %c0_i32_2 = arith.constant 0 : i32
    return %c0_i32, %c0_i32_0, %c0_i32_1 : i32, i32, i32
  }
  func.func @transform_5(%arg0: i32) -> (i32, i32, i32) {
    %c0_i32 = arith.constant 0 : i32
    %c0_i32_0 = arith.constant 0 : i32
    %c0_i32_1 = arith.constant 0 : i32
    %c0_i32_2 = arith.constant 0 : i32
    return %c0_i32, %c0_i32_0, %c0_i32_1 : i32, i32, i32
  }
  func.func @transform_6(%arg0: i32) -> (i32, i32) {
    %c0_i32 = arith.constant 0 : i32
    %c0_i32_0 = arith.constant 0 : i32
    %c0_i32_1 = arith.constant 0 : i32
    return %c0_i32, %c0_i32_0 : i32, i32
  }
  func.func @transform_7(%arg0: i32) -> (i32, i32) {
    %c0_i32 = arith.constant 0 : i32
    %c0_i32_0 = arith.constant 0 : i32
    %c0_i32_1 = arith.constant 0 : i32
    return %c0_i32, %c0_i32_0 : i32, i32
  }
  func.func @transform_8(%arg0: i32) -> (i32, i32) {
    %c0_i32 = arith.constant 0 : i32
    %c0_i32_0 = arith.constant 0 : i32
    %c0_i32_1 = arith.constant 0 : i32
    return %c0_i32, %c0_i32_0 : i32, i32
  }
  func.func @transform_9(%arg0: i32) -> (i32, i32) {
    %c0_i32 = arith.constant 0 : i32
    %c0_i32_0 = arith.constant 0 : i32
    %c0_i32_1 = arith.constant 0 : i32
    return %c0_i32, %c0_i32_0 : i32, i32
  }
  func.func @transform_10(%arg0: i32) -> (i32, i32) {
    %c0_i32 = arith.constant 0 : i32
    %c0_i32_0 = arith.constant 0 : i32
    %c0_i32_1 = arith.constant 0 : i32
    return %c0_i32, %c0_i32_0 : i32, i32
  }
  func.func @transform_11(%arg0: i32) -> (i32, i32) {
    %c0_i32 = arith.constant 0 : i32
    %c0_i32_0 = arith.constant 0 : i32
    %c0_i32_1 = arith.constant 0 : i32
    return %c0_i32, %c0_i32_0 : i32, i32
  }
  func.func @transform_12(%arg0: i32) -> (i32, i32) {
    %c0_i32 = arith.constant 0 : i32
    %c0_i32_0 = arith.constant 0 : i32
    %c0_i32_1 = arith.constant 0 : i32
    return %c0_i32, %c0_i32_0 : i32, i32
  }
  func.func @transform_13(%arg0: i32) -> (i32, i32) {
    %c0_i32 = arith.constant 0 : i32
    %c0_i32_0 = arith.constant 0 : i32
    %c0_i32_1 = arith.constant 0 : i32
    return %c0_i32, %c0_i32_0 : i32, i32
  }
  func.func @transform_14(%arg0: i32) -> (i32, i32) {
    %c0_i32 = arith.constant 0 : i32
    %c0_i32_0 = arith.constant 0 : i32
    %c0_i32_1 = arith.constant 0 : i32
    return %c0_i32, %c0_i32_0 : i32, i32
  }
  func.func @transform_15(%arg0: i32) -> (i32, i32) {
    %c0_i32 = arith.constant 0 : i32
    %c0_i32_0 = arith.constant 0 : i32
    %c0_i32_1 = arith.constant 0 : i32
    return %c0_i32, %c0_i32_0 : i32, i32
  }
}

</mosaic_0001>

<llo_original>
// kernel: encoder_forward.1
$region0: #{encoder_forward.1}
  #allocation0 [shape = 'u32[]', space=smem, size = 0x4, offset = 0x4, fixed_abs, tag = 'smem constant byte address 0x4 - core index']
  #allocation1 [shape = 'u32[72,128]{1,0:T(1,128)}', space=vmem, size = 0x9000, scoped, tag = 'internal scratch']
  %s0 = inlined_call_operand.vmem [shape: f32[16,32], index: 0, kind: input, shape index: {}]
  %s1 = inlined_call_operand.vmem [shape: f32[8,8], index: 1, kind: input, shape index: {}]
  %s2 = inlined_call_operand.vmem [shape: f32[4,32,8], index: 2, kind: input, shape index: {}]
  %s3 = inlined_call_operand.vmem [shape: f32[4,32,8], index: 3, kind: input, shape index: {}]
  %s4 = inlined_call_operand.vmem [shape: f32[4,32,8], index: 4, kind: input, shape index: {}]
  %s5 = inlined_call_operand.vmem [shape: f32[4,8,32], index: 5, kind: input, shape index: {}]
  %s6 = inlined_call_operand.vmem [shape: f32[1,32], index: 6, kind: input, shape index: {}]
  %s7 = inlined_call_operand.vmem [shape: f32[1,32], index: 7, kind: input, shape index: {}]
  %s8 = inlined_call_operand.vmem [shape: f32[1,32], index: 8, kind: input, shape index: {}]
  %s9 = inlined_call_operand.vmem [shape: f32[32,128], index: 9, kind: input, shape index: {}]
  %s10 = inlined_call_operand.vmem [shape: f32[1,128], index: 10, kind: input, shape index: {}]
  %s11 = inlined_call_operand.vmem [shape: f32[128,32], index: 11, kind: input, shape index: {}]
  %s12 = inlined_call_operand.vmem [shape: f32[1,32], index: 12, kind: input, shape index: {}]
  %s13 = inlined_call_operand.vmem [shape: f32[1,32], index: 13, kind: input, shape index: {}]
  %s14 = inlined_call_operand.vmem [shape: f32[1,32], index: 14, kind: input, shape index: {}]
  %s15 = inlined_call_operand.hbm [shape: f32[16,32], index: 15, kind: output, shape index: {}]
  %s16 = sld [smem:[#allocation0]]
  $region70: #{encoder_forward.1} parent=0
    _
  %s18 = ssub.s32 1, %s16
  %s19 = scalar_select 0, %s18, %s16
  $region1: #{encoder_forward.1} parent=0
    #allocation2 [shape = 'u8[8192]{0}', space=vmem, size = 0x2000, scoped, tag = 'output window, operand 0, single buffered']
    #allocation3 [shape = 's32[1]{0}', space=sflag, size = 0x4, scoped, tag = 'scoped memory for encoder_forward.1']
    %20 = vsyncpa [#allocation3], 0
    // Predicated region
    $region2: #{encoder_forward.1} parent=1 // pred_check
      _
    $region3: #{encoder_forward.1} parent=1 // pred_check_branch
      %22 = sbr.rel (0) target = $region5
    $region4: #{encoder_forward.1} parent=1 // pred_region
      _
    $region5: #{encoder_forward.1} parent=1 // pred_fallthru
      _
    // Predicated region
    $region6: #{encoder_forward.1} parent=1 // pred_check
      _
    $region7: #{encoder_forward.1} parent=1 // pred_check_branch
      %24 = sbr.rel (0) target = $region9
    $region8: #{encoder_forward.1} parent=1 // pred_region
      _
    $region9: #{encoder_forward.1} parent=1 // pred_fallthru
      _
    // Predicated region
    $region10: #{encoder_forward.1} parent=1 // pred_check
      _
    $region11: #{encoder_forward.1} parent=1 // pred_check_branch
      %26 = sbr.rel (0) target = $region13
    $region12: #{encoder_forward.1} parent=1 // pred_region
      _
    $region13: #{encoder_forward.1} parent=1 // pred_fallthru
      _
    // Predicated region
    $region14: #{encoder_forward.1} parent=1 // pred_check
      _
    $region15: #{encoder_forward.1} parent=1 // pred_check_branch
      %28 = sbr.rel (0) target = $region17
    $region16: #{encoder_forward.1} parent=1 // pred_region
      _
    $region17: #{encoder_forward.1} parent=1 // pred_fallthru
      _
    // Predicated region
    $region18: #{encoder_forward.1} parent=1 // pred_check
      _
    $region19: #{encoder_forward.1} parent=1 // pred_check_branch
      %30 = sbr.rel (0) target = $region21
    $region20: #{encoder_forward.1} parent=1 // pred_region
      _
    $region21: #{encoder_forward.1} parent=1 // pred_fallthru
      _
    // Predicated region
    $region22: #{encoder_forward.1} parent=1 // pred_check
      _
    $region23: #{encoder_forward.1} parent=1 // pred_check_branch
      %32 = sbr.rel (0) target = $region25
    $region24: #{encoder_forward.1} parent=1 // pred_region
      _
    $region25: #{encoder_forward.1} parent=1 // pred_fallthru
      _
    // Predicated region
    $region26: #{encoder_forward.1} parent=1 // pred_check
      _
    $region27: #{encoder_forward.1} parent=1 // pred_check_branch
      %34 = sbr.rel (0) target = $region29
    $region28: #{encoder_forward.1} parent=1 // pred_region
      _
    $region29: #{encoder_forward.1} parent=1 // pred_fallthru
      _
    // Predicated region
    $region30: #{encoder_forward.1} parent=1 // pred_check
      _
    $region31: #{encoder_forward.1} parent=1 // pred_check_branch
      %36 = sbr.rel (0) target = $region33
    $region32: #{encoder_forward.1} parent=1 // pred_region
      _
    $region33: #{encoder_forward.1} parent=1 // pred_fallthru
      _
    // Predicated region
    $region34: #{encoder_forward.1} parent=1 // pred_check
      _
    $region35: #{encoder_forward.1} parent=1 // pred_check_branch
      %38 = sbr.rel (0) target = $region37
    $region36: #{encoder_forward.1} parent=1 // pred_region
      _
    $region37: #{encoder_forward.1} parent=1 // pred_fallthru
      _
    // Predicated region
    $region38: #{encoder_forward.1} parent=1 // pred_check
      _
    $region39: #{encoder_forward.1} parent=1 // pred_check_branch
      %40 = sbr.rel (0) target = $region41
    $region40: #{encoder_forward.1} parent=1 // pred_region
      _
    $region41: #{encoder_forward.1} parent=1 // pred_fallthru
      _
    // Predicated region
    $region42: #{encoder_forward.1} parent=1 // pred_check
      _
    $region43: #{encoder_forward.1} parent=1 // pred_check_branch
      %42 = sbr.rel (0) target = $region45
    $region44: #{encoder_forward.1} parent=1 // pred_region
      _
    $region45: #{encoder_forward.1} parent=1 // pred_fallthru
      _
    // Predicated region
    $region46: #{encoder_forward.1} parent=1 // pred_check
      _
    $region47: #{encoder_forward.1} parent=1 // pred_check_branch
      %44 = sbr.rel (0) target = $region49
    $region48: #{encoder_forward.1} parent=1 // pred_region
      _
    $region49: #{encoder_forward.1} parent=1 // pred_fallthru
      _
    // Predicated region
    $region50: #{encoder_forward.1} parent=1 // pred_check
      _
    $region51: #{encoder_forward.1} parent=1 // pred_check_branch
      %46 = sbr.rel (0) target = $region53
    $region52: #{encoder_forward.1} parent=1 // pred_region
      _
    $region53: #{encoder_forward.1} parent=1 // pred_fallthru
      _
    // Predicated region
    $region54: #{encoder_forward.1} parent=1 // pred_check
      _
    $region55: #{encoder_forward.1} parent=1 // pred_check_branch
      %48 = sbr.rel (0) target = $region57
    $region56: #{encoder_forward.1} parent=1 // pred_region
      _
    $region57: #{encoder_forward.1} parent=1 // pred_fallthru
      _
    // Predicated region
    $region58: #{encoder_forward.1} parent=1 // pred_check
      _
    $region59: #{encoder_forward.1} parent=1 // pred_check_branch
      %50 = sbr.rel (0) target = $region61
    $region60: #{encoder_forward.1} parent=1 // pred_region
      _
    $region61: #{encoder_forward.1} parent=1 // pred_fallthru
      _
    %v51 = vld [vmem:[%s0] sm:$0xff]
    %v52 = vld [vmem:[%s0 + $0x8] sm:$0xff]
    %v53 = vld [vmem:[%s2] sm:$0xff]
    %v54 = vld [vmem:[%s2 + $0x8] sm:$0xff]
    %v55 = vld [vmem:[%s2 + $0x10] sm:$0xff]
    %v56 = vld [vmem:[%s2 + $0x18] sm:$0xff]
    %vm57 = vcmask 261120
    %v59 = vsel %vm57, %v51, 0
    %v62 = vsel %vm57, %v52, 0
    %64 = vmatpush.msra.mxu0 0.0
    %65 = vmatpush.msra.mxu0 0.0
    %66 = vmatpush.msra.mxu0 0.0
    %67 = vmatpush.msra.mxu0 0.0
    %68 = vmatpush.msra.mxu0 0.0
    %69 = vmatpush.msra.mxu0 0.0
    %70 = vmatpush.msra.mxu0 0.0
    %71 = vmatpush.msra.mxu0 0.0
    %72 = vmatpush.msra.mxu0 0.0
    %73 = vmatpush.msra.mxu0 0.0
    %74 = vmatpush.msra.mxu0 0.0
    %75 = vmatpush.msra.mxu0 0.0
    %76 = vmatpush.msra.mxu0 %v56
    %77 = vmatpush.msra.mxu0 %v55
    %78 = vmatpush.msra.mxu0 %v54
    %79 = vmatpush.msra.mxu0 %v53
    %80 = vmatmul.f32.gmra.mxu0 %v59
    %v81 = vpop.f32.mrf.mxu0
    %v82 = vadd.f32 0.0, %v81
    %83 = vmatmul.f32.gmra.mxu0 %v62
    %v84 = vpop.f32.mrf.mxu0
    %v85 = vadd.f32 0.0, %v84
    %86 = vdwg.mxu0
    %s87 = scalar_lea.vmem %s2, 32
    %v88 = vld [vmem:[%s87] sm:$0xff]
    %v89 = vld [vmem:[%s87 + $0x8] sm:$0xff]
    %v90 = vld [vmem:[%s87 + $0x10] sm:$0xff]
    %v91 = vld [vmem:[%s87 + $0x18] sm:$0xff]
    %92 = vmatpush.msra.mxu0 0.0
    %93 = vmatpush.msra.mxu0 0.0
    %94 = vmatpush.msra.mxu0 0.0
    %95 = vmatpush.msra.mxu0 0.0
    %96 = vmatpush.msra.mxu0 0.0
    %97 = vmatpush.msra.mxu0 0.0
    %98 = vmatpush.msra.mxu0 0.0
    %99 = vmatpush.msra.mxu0 0.0
    %100 = vmatpush.msra.mxu0 0.0
    %101 = vmatpush.msra.mxu0 0.0
    %102 = vmatpush.msra.mxu0 0.0
    %103 = vmatpush.msra.mxu0 0.0
    %104 = vmatpush.msra.mxu0 %v91
    %105 = vmatpush.msra.mxu0 %v90
    %106 = vmatpush.msra.mxu0 %v89
    %107 = vmatpush.msra.mxu0 %v88
    %108 = vmatmul.f32.gmra.mxu0 %v59
    %v109 = vpop.f32.mrf.mxu0
    %v110 = vadd.f32 0.0, %v109
    %111 = vmatmul.f32.gmra.mxu0 %v62
    %v112 = vpop.f32.mrf.mxu0
    %v113 = vadd.f32 0.0, %v112
    %114 = vdwg.mxu0
    %s115 = scalar_lea.vmem %s2, 64
    %v116 = vld [vmem:[%s115] sm:$0xff]
    %v117 = vld [vmem:[%s115 + $0x8] sm:$0xff]
    %v118 = vld [vmem:[%s115 + $0x10] sm:$0xff]
    %v119 = vld [vmem:[%s115 + $0x18] sm:$0xff]
    %120 = vmatpush.msra.mxu0 0.0
    %121 = vmatpush.msra.mxu0 0.0
    %122 = vmatpush.msra.mxu0 0.0
    %123 = vmatpush.msra.mxu0 0.0
    %124 = vmatpush.msra.mxu0 0.0
    %125 = vmatpush.msra.mxu0 0.0
    %126 = vmatpush.msra.mxu0 0.0
    %127 = vmatpush.msra.mxu0 0.0
    %128 = vmatpush.msra.mxu0 0.0
    %129 = vmatpush.msra.mxu0 0.0
    %130 = vmatpush.msra.mxu0 0.0
    %131 = vmatpush.msra.mxu0 0.0
    %132 = vmatpush.msra.mxu0 %v119
    %133 = vmatpush.msra.mxu0 %v118
    %134 = vmatpush.msra.mxu0 %v117
    %135 = vmatpush.msra.mxu0 %v116
    %136 = vmatmul.f32.gmra.mxu0 %v59
    %v137 = vpop.f32.mrf.mxu0
    %v138 = vadd.f32 0.0, %v137
    %139 = vmatmul.f32.gmra.mxu0 %v62
    %v140 = vpop.f32.mrf.mxu0
    %v141 = vadd.f32 0.0, %v140
    %142 = vdwg.mxu0
    %s143 = scalar_lea.vmem %s2, 96
    %v144 = vld [vmem:[%s143] sm:$0xff]
    %v145 = vld [vmem:[%s143 + $0x8] sm:$0xff]
    %v146 = vld [vmem:[%s143 + $0x10] sm:$0xff]
    %v147 = vld [vmem:[%s143 + $0x18] sm:$0xff]
    %148 = vmatpush.msra.mxu0 0.0
    %149 = vmatpush.msra.mxu0 0.0
    %150 = vmatpush.msra.mxu0 0.0
    %151 = vmatpush.msra.mxu0 0.0
    %152 = vmatpush.msra.mxu0 0.0
    %153 = vmatpush.msra.mxu0 0.0
    %154 = vmatpush.msra.mxu0 0.0
    %155 = vmatpush.msra.mxu0 0.0
    %156 = vmatpush.msra.mxu0 0.0
    %157 = vmatpush.msra.mxu0 0.0
    %158 = vmatpush.msra.mxu0 0.0
    %159 = vmatpush.msra.mxu0 0.0
    %160 = vmatpush.msra.mxu0 %v147
    %161 = vmatpush.msra.mxu0 %v146
    %162 = vmatpush.msra.mxu0 %v145
    %163 = vmatpush.msra.mxu0 %v144
    %164 = vmatmul.f32.gmra.mxu0 %v59
    %v165 = vpop.f32.mrf.mxu0
    %v166 = vadd.f32 0.0, %v165
    %167 = vmatmul.f32.gmra.mxu0 %v62
    %v168 = vpop.f32.mrf.mxu0
    %v169 = vadd.f32 0.0, %v168
    %170 = vdwg.mxu0
    %v171 = vld [vmem:[%s3] sm:$0xff]
    %v172 = vld [vmem:[%s3 + $0x8] sm:$0xff]
    %v173 = vld [vmem:[%s3 + $0x10] sm:$0xff]
    %v174 = vld [vmem:[%s3 + $0x18] sm:$0xff]
    %175 = vmatpush.msra.mxu0 0.0
    %176 = vmatpush.msra.mxu0 0.0
    %177 = vmatpush.msra.mxu0 0.0
    %178 = vmatpush.msra.mxu0 0.0
    %179 = vmatpush.msra.mxu0 0.0
    %180 = vmatpush.msra.mxu0 0.0
    %181 = vmatpush.msra.mxu0 0.0
    %182 = vmatpush.msra.mxu0 0.0
    %183 = vmatpush.msra.mxu0 0.0
    %184 = vmatpush.msra.mxu0 0.0
    %185 = vmatpush.msra.mxu0 0.0
    %186 = vmatpush.msra.mxu0 0.0
    %187 = vmatpush.msra.mxu0 %v174
    %188 = vmatpush.msra.mxu0 %v173
    %189 = vmatpush.msra.mxu0 %v172
    %190 = vmatpush.msra.mxu0 %v171
    %191 = vmatmul.f32.gmra.mxu0 %v59
    %v192 = vpop.f32.mrf.mxu0
    %v193 = vadd.f32 0.0, %v192
    %194 = vmatmul.f32.gmra.mxu0 %v62
    %v195 = vpop.f32.mrf.mxu0
    %v196 = vadd.f32 0.0, %v195
    %197 = vdwg.mxu0
    %s198 = scalar_lea.vmem %s3, 32
    %v199 = vld [vmem:[%s198] sm:$0xff]
    %v200 = vld [vmem:[%s198 + $0x8] sm:$0xff]
    %v201 = vld [vmem:[%s198 + $0x10] sm:$0xff]
    %v202 = vld [vmem:[%s198 + $0x18] sm:$0xff]
    %203 = vmatpush.msra.mxu0 0.0
    %204 = vmatpush.msra.mxu0 0.0
    %205 = vmatpush.msra.mxu0 0.0
    %206 = vmatpush.msra.mxu0 0.0
    %207 = vmatpush.msra.mxu0 0.0
    %208 = vmatpush.msra.mxu0 0.0
    %209 = vmatpush.msra.mxu0 0.0
    %210 = vmatpush.msra.mxu0 0.0
    %211 = vmatpush.msra.mxu0 0.0
    %212 = vmatpush.msra.mxu0 0.0
    %213 = vmatpush.msra.mxu0 0.0
    %214 = vmatpush.msra.mxu0 0.0
    %215 = vmatpush.msra.mxu0 %v202
    %216 = vmatpush.msra.mxu0 %v201
    %217 = vmatpush.msra.mxu0 %v200
    %218 = vmatpush.msra.mxu0 %v199
    %219 = vmatmul.f32.gmra.mxu0 %v59
    %v220 = vpop.f32.mrf.mxu0
    %v221 = vadd.f32 0.0, %v220
    %222 = vmatmul.f32.gmra.mxu0 %v62
    %v223 = vpop.f32.mrf.mxu0
    %v224 = vadd.f32 0.0, %v223
    %225 = vdwg.mxu0
    %s226 = scalar_lea.vmem %s3, 64
    %v227 = vld [vmem:[%s226] sm:$0xff]
    %v228 = vld [vmem:[%s226 + $0x8] sm:$0xff]
    %v229 = vld [vmem:[%s226 + $0x10] sm:$0xff]
    %v230 = vld [vmem:[%s226 + $0x18] sm:$0xff]
    %231 = vmatpush.msra.mxu0 0.0
    %232 = vmatpush.msra.mxu0 0.0
    %233 = vmatpush.msra.mxu0 0.0
    %234 = vmatpush.msra.mxu0 0.0
    %235 = vmatpush.msra.mxu0 0.0
    %236 = vmatpush.msra.mxu0 0.0
    %237 = vmatpush.msra.mxu0 0.0
    %238 = vmatpush.msra.mxu0 0.0
    %239 = vmatpush.msra.mxu0 0.0
    %240 = vmatpush.msra.mxu0 0.0
    %241 = vmatpush.msra.mxu0 0.0
    %242 = vmatpush.msra.mxu0 0.0
    %243 = vmatpush.msra.mxu0 %v230
    %244 = vmatpush.msra.mxu0 %v229
    %245 = vmatpush.msra.mxu0 %v228
    %246 = vmatpush.msra.mxu0 %v227
    %247 = vmatmul.f32.gmra.mxu0 %v59
    %v248 = vpop.f32.mrf.mxu0
    %v249 = vadd.f32 0.0, %v248
    %250 = vmatmul.f32.gmra.mxu0 %v62
    %v251 = vpop.f32.mrf.mxu0
    %v252 = vadd.f32 0.0, %v251
    %253 = vdwg.mxu0
    %s254 = scalar_lea.vmem %s3, 96
    %v255 = vld [vmem:[%s254] sm:$0xff]
    %v256 = vld [vmem:[%s254 + $0x8] sm:$0xff]
    %v257 = vld [vmem:[%s254 + $0x10] sm:$0xff]
    %v258 = vld [vmem:[%s254 + $0x18] sm:$0xff]
    %259 = vmatpush.msra.mxu0 0.0
    %260 = vmatpush.msra.mxu0 0.0
    %261 = vmatpush.msra.mxu0 0.0
    %262 = vmatpush.msra.mxu0 0.0
    %263 = vmatpush.msra.mxu0 0.0
    %264 = vmatpush.msra.mxu0 0.0
    %265 = vmatpush.msra.mxu0 0.0
    %266 = vmatpush.msra.mxu0 0.0
    %267 = vmatpush.msra.mxu0 0.0
    %268 = vmatpush.msra.mxu0 0.0
    %269 = vmatpush.msra.mxu0 0.0
    %270 = vmatpush.msra.mxu0 0.0
    %271 = vmatpush.msra.mxu0 %v258
    %272 = vmatpush.msra.mxu0 %v257
    %273 = vmatpush.msra.mxu0 %v256
    %274 = vmatpush.msra.mxu0 %v255
    %275 = vmatmul.f32.gmra.mxu0 %v59
    %v276 = vpop.f32.mrf.mxu0
    %v277 = vadd.f32 0.0, %v276
    %278 = vmatmul.f32.gmra.mxu0 %v62
    %v279 = vpop.f32.mrf.mxu0
    %v280 = vadd.f32 0.0, %v279
    %281 = vdwg.mxu0
    %v282 = vld [vmem:[%s4] sm:$0xff]
    %v283 = vld [vmem:[%s4 + $0x8] sm:$0xff]
    %v284 = vld [vmem:[%s4 + $0x10] sm:$0xff]
    %v285 = vld [vmem:[%s4 + $0x18] sm:$0xff]
    %286 = vmatpush.msra.mxu0 0.0
    %287 = vmatpush.msra.mxu0 0.0
    %288 = vmatpush.msra.mxu0 0.0
    %289 = vmatpush.msra.mxu0 0.0
    %290 = vmatpush.msra.mxu0 0.0
    %291 = vmatpush.msra.mxu0 0.0
    %292 = vmatpush.msra.mxu0 0.0
    %293 = vmatpush.msra.mxu0 0.0
    %294 = vmatpush.msra.mxu0 0.0
    %295 = vmatpush.msra.mxu0 0.0
    %296 = vmatpush.msra.mxu0 0.0
    %297 = vmatpush.msra.mxu0 0.0
    %298 = vmatpush.msra.mxu0 %v285
    %299 = vmatpush.msra.mxu0 %v284
    %300 = vmatpush.msra.mxu0 %v283
    %301 = vmatpush.msra.mxu0 %v282
    %302 = vmatmul.f32.gmra.mxu0 %v59
    %v303 = vpop.f32.mrf.mxu0
    %v304 = vadd.f32 0.0, %v303
    %305 = vmatmul.f32.gmra.mxu0 %v62
    %v306 = vpop.f32.mrf.mxu0
    %v307 = vadd.f32 0.0, %v306
    %308 = vdwg.mxu0
    %s309 = scalar_lea.vmem %s4, 32
    %v310 = vld [vmem:[%s309] sm:$0xff]
    %v311 = vld [vmem:[%s309 + $0x8] sm:$0xff]
    %v312 = vld [vmem:[%s309 + $0x10] sm:$0xff]
    %v313 = vld [vmem:[%s309 + $0x18] sm:$0xff]
    %314 = vmatpush.msra.mxu0 0.0
    %315 = vmatpush.msra.mxu0 0.0
    %316 = vmatpush.msra.mxu0 0.0
    %317 = vmatpush.msra.mxu0 0.0
    %318 = vmatpush.msra.mxu0 0.0
    %319 = vmatpush.msra.mxu0 0.0
    %320 = vmatpush.msra.mxu0 0.0
    %321 = vmatpush.msra.mxu0 0.0
    %322 = vmatpush.msra.mxu0 0.0
    %323 = vmatpush.msra.mxu0 0.0
    %324 = vmatpush.msra.mxu0 0.0
    %325 = vmatpush.msra.mxu0 0.0
    %326 = vmatpush.msra.mxu0 %v313
    %327 = vmatpush.msra.mxu0 %v312
    %328 = vmatpush.msra.mxu0 %v311
    %329 = vmatpush.msra.mxu0 %v310
    %330 = vmatmul.f32.gmra.mxu0 %v59
    %v331 = vpop.f32.mrf.mxu0
    %v332 = vadd.f32 0.0, %v331
    %333 = vmatmul.f32.gmra.mxu0 %v62
    %v334 = vpop.f32.mrf.mxu0
    %v335 = vadd.f32 0.0, %v334
    %336 = vdwg.mxu0
    %s337 = scalar_lea.vmem %s4, 64
    %v338 = vld [vmem:[%s337] sm:$0xff]
    %v339 = vld [vmem:[%s337 + $0x8] sm:$0xff]
    %v340 = vld [vmem:[%s337 + $0x10] sm:$0xff]
    %v341 = vld [vmem:[%s337 + $0x18] sm:$0xff]
    %342 = vmatpush.msra.mxu0 0.0
    %343 = vmatpush.msra.mxu0 0.0
    %344 = vmatpush.msra.mxu0 0.0
    %345 = vmatpush.msra.mxu0 0.0
    %346 = vmatpush.msra.mxu0 0.0
    %347 = vmatpush.msra.mxu0 0.0
    %348 = vmatpush.msra.mxu0 0.0
    %349 = vmatpush.msra.mxu0 0.0
    %350 = vmatpush.msra.mxu0 0.0
    %351 = vmatpush.msra.mxu0 0.0
    %352 = vmatpush.msra.mxu0 0.0
    %353 = vmatpush.msra.mxu0 0.0
    %354 = vmatpush.msra.mxu0 %v341
    %355 = vmatpush.msra.mxu0 %v340
    %356 = vmatpush.msra.mxu0 %v339
    %357 = vmatpush.msra.mxu0 %v338
    %358 = vmatmul.f32.gmra.mxu0 %v59
    %v359 = vpop.f32.mrf.mxu0
    %v360 = vadd.f32 0.0, %v359
    %361 = vmatmul.f32.gmra.mxu0 %v62
    %v362 = vpop.f32.mrf.mxu0
    %v363 = vadd.f32 0.0, %v362
    %364 = vdwg.mxu0
    %s365 = scalar_lea.vmem %s4, 96
    %v366 = vld [vmem:[%s365] sm:$0xff]
    %v367 = vld [vmem:[%s365 + $0x8] sm:$0xff]
    %v368 = vld [vmem:[%s365 + $0x10] sm:$0xff]
    %v369 = vld [vmem:[%s365 + $0x18] sm:$0xff]
    %370 = vmatpush.msra.mxu0 0.0
    %371 = vmatpush.msra.mxu0 0.0
    %372 = vmatpush.msra.mxu0 0.0
    %373 = vmatpush.msra.mxu0 0.0
    %374 = vmatpush.msra.mxu0 0.0
    %375 = vmatpush.msra.mxu0 0.0
    %376 = vmatpush.msra.mxu0 0.0
    %377 = vmatpush.msra.mxu0 0.0
    %378 = vmatpush.msra.mxu0 0.0
    %379 = vmatpush.msra.mxu0 0.0
    %380 = vmatpush.msra.mxu0 0.0
    %381 = vmatpush.msra.mxu0 0.0
    %382 = vmatpush.msra.mxu0 %v369
    %383 = vmatpush.msra.mxu0 %v368
    %384 = vmatpush.msra.mxu0 %v367
    %385 = vmatpush.msra.mxu0 %v366
    %386 = vmatmul.f32.gmra.mxu0 %v59
    %v387 = vpop.f32.mrf.mxu0
    %v388 = vadd.f32 0.0, %v387
    %389 = vmatmul.f32.gmra.mxu0 %v62
    %v390 = vpop.f32.mrf.mxu0
    %v391 = vadd.f32 0.0, %v390
    %392 = vdwg.mxu0
    %v393 = vld [vmem:[%s1] sm:$0xff]
    %v395 = vrot.slane %v393, 1
    %v396 = vrot.slane %v393, 2
    %v397 = vrot.slane %v393, 3
    %v398 = vrot.slane %v393, 4
    %v399 = vrot.slane %v393, 5
    %v400 = vrot.slane %v393, 6
    %v401 = vrot.slane %v393, 7
    %v402 = vperm.slane %v393, 0
    %v403 = vperm.slane %v395, 0
    %v404 = vperm.slane %v396, 0
    %v405 = vperm.slane %v397, 0
    %v406 = vperm.slane %v398, 0
    %v407 = vperm.slane %v399, 0
    %v408 = vperm.slane %v400, 0
    %v409 = vperm.slane %v401, 0
    %vm418 = vcmask 64512
    %v420 = vsel %vm418, %v82, 0
    %v423 = vsel %vm418, %v193, 0
    %425 = vmatpush.xpose.msra.mxu0 0.0
    %426 = vmatpush.xpose.msra.mxu0 0.0
    %427 = vmatpush.xpose.msra.mxu0 0.0
    %428 = vmatpush.xpose.msra.mxu0 0.0
    %429 = vmatpush.xpose.msra.mxu0 0.0
    %430 = vmatpush.xpose.msra.mxu0 0.0
    %431 = vmatpush.xpose.msra.mxu0 0.0
    %432 = vmatpush.xpose.msra.mxu0 0.0
    %433 = vmatpush.xpose.msra.mxu0 0.0
    %434 = vmatpush.xpose.msra.mxu0 0.0
    %435 = vmatpush.xpose.msra.mxu0 0.0
    %436 = vmatpush.xpose.msra.mxu0 0.0
    %437 = vmatpush.xpose.msra.mxu0 0.0
    %438 = vmatpush.xpose.msra.mxu0 0.0
    %439 = vmatpush.xpose.msra.mxu0 0.0
    %440 = vmatpush.xpose.msra.mxu0 %v423
    %441 = vmatmul.f32.gmra.mxu0 %v420
    %v442 = vpop.f32.mrf.mxu0
    %v443 = vadd.f32 %v402, %v442
    %444 = vdwg.mxu0
    %v446 = vsel %vm418, %v85, 0
    %v449 = vsel %vm418, %v196, 0
    %451 = vmatpush.xpose.msra.mxu0 0.0
    %452 = vmatpush.xpose.msra.mxu0 0.0
    %453 = vmatpush.xpose.msra.mxu0 0.0
    %454 = vmatpush.xpose.msra.mxu0 0.0
    %455 = vmatpush.xpose.msra.mxu0 0.0
    %456 = vmatpush.xpose.msra.mxu0 0.0
    %457 = vmatpush.xpose.msra.mxu0 0.0
    %458 = vmatpush.xpose.msra.mxu0 0.0
    %459 = vmatpush.xpose.msra.mxu0 0.0
    %460 = vmatpush.xpose.msra.mxu0 0.0
    %461 = vmatpush.xpose.msra.mxu0 0.0
    %462 = vmatpush.xpose.msra.mxu0 0.0
    %463 = vmatpush.xpose.msra.mxu0 0.0
    %464 = vmatpush.xpose.msra.mxu0 0.0
    %465 = vmatpush.xpose.msra.mxu0 0.0
    %466 = vmatpush.xpose.msra.mxu0 %v449
    %467 = vmatmul.f32.gmra.mxu0 %v446
    %v468 = vpop.f32.mrf.mxu0
    %v469 = vadd.f32 %v403, %v468
    %470 = vdwg.mxu0
    %v472 = vsel %vm418, %v110, 0
    %v475 = vsel %vm418, %v221, 0
    %477 = vmatpush.xpose.msra.mxu0 0.0
    %478 = vmatpush.xpose.msra.mxu0 0.0
    %479 = vmatpush.xpose.msra.mxu0 0.0
    %480 = vmatpush.xpose.msra.mxu0 0.0
    %481 = vmatpush.xpose.msra.mxu0 0.0
    %482 = vmatpush.xpose.msra.mxu0 0.0
    %483 = vmatpush.xpose.msra.mxu0 0.0
    %484 = vmatpush.xpose.msra.mxu0 0.0
    %485 = vmatpush.xpose.msra.mxu0 0.0
    %486 = vmatpush.xpose.msra.mxu0 0.0
    %487 = vmatpush.xpose.msra.mxu0 0.0
    %488 = vmatpush.xpose.msra.mxu0 0.0
    %489 = vmatpush.xpose.msra.mxu0 0.0
    %490 = vmatpush.xpose.msra.mxu0 0.0
    %491 = vmatpush.xpose.msra.mxu0 0.0
    %492 = vmatpush.xpose.msra.mxu0 %v475
    %493 = vmatmul.f32.gmra.mxu0 %v472
    %v494 = vpop.f32.mrf.mxu0
    %v495 = vadd.f32 %v404, %v494
    %496 = vdwg.mxu0
    %v498 = vsel %vm418, %v113, 0
    %v501 = vsel %vm418, %v224, 0
    %503 = vmatpush.xpose.msra.mxu0 0.0
    %504 = vmatpush.xpose.msra.mxu0 0.0
    %505 = vmatpush.xpose.msra.mxu0 0.0
    %506 = vmatpush.xpose.msra.mxu0 0.0
    %507 = vmatpush.xpose.msra.mxu0 0.0
    %508 = vmatpush.xpose.msra.mxu0 0.0
    %509 = vmatpush.xpose.msra.mxu0 0.0
    %510 = vmatpush.xpose.msra.mxu0 0.0
    %511 = vmatpush.xpose.msra.mxu0 0.0
    %512 = vmatpush.xpose.msra.mxu0 0.0
    %513 = vmatpush.xpose.msra.mxu0 0.0
    %514 = vmatpush.xpose.msra.mxu0 0.0
    %515 = vmatpush.xpose.msra.mxu0 0.0
    %516 = vmatpush.xpose.msra.mxu0 0.0
    %517 = vmatpush.xpose.msra.mxu0 0.0
    %518 = vmatpush.xpose.msra.mxu0 %v501
    %519 = vmatmul.f32.gmra.mxu0 %v498
    %v520 = vpop.f32.mrf.mxu0
    %v521 = vadd.f32 %v405, %v520
    %522 = vdwg.mxu0
    %v524 = vsel %vm418, %v138, 0
    %v527 = vsel %vm418, %v249, 0
    %529 = vmatpush.xpose.msra.mxu0 0.0
    %530 = vmatpush.xpose.msra.mxu0 0.0
    %531 = vmatpush.xpose.msra.mxu0 0.0
    %532 = vmatpush.xpose.msra.mxu0 0.0
    %533 = vmatpush.xpose.msra.mxu0 0.0
    %534 = vmatpush.xpose.msra.mxu0 0.0
    %535 = vmatpush.xpose.msra.mxu0 0.0
    %536 = vmatpush.xpose.msra.mxu0 0.0
    %537 = vmatpush.xpose.msra.mxu0 0.0
    %538 = vmatpush.xpose.msra.mxu0 0.0
    %539 = vmatpush.xpose.msra.mxu0 0.0
    %540 = vmatpush.xpose.msra.mxu0 0.0
    %541 = vmatpush.xpose.msra.mxu0 0.0
    %542 = vmatpush.xpose.msra.mxu0 0.0
    %543 = vmatpush.xpose.msra.mxu0 0.0
    %544 = vmatpush.xpose.msra.mxu0 %v527
    %545 = vmatmul.f32.gmra.mxu0 %v524
    %v546 = vpop.f32.mrf.mxu0
    %v547 = vadd.f32 %v406, %v546
    %548 = vdwg.mxu0
    %v550 = vsel %vm418, %v141, 0
    %v553 = vsel %vm418, %v252, 0
    %555 = vmatpush.xpose.msra.mxu0 0.0
    %556 = vmatpush.xpose.msra.mxu0 0.0
    %557 = vmatpush.xpose.msra.mxu0 0.0
    %558 = vmatpush.xpose.msra.mxu0 0.0
    %559 = vmatpush.xpose.msra.mxu0 0.0
    %560 = vmatpush.xpose.msra.mxu0 0.0
    %561 = vmatpush.xpose.msra.mxu0 0.0
    %562 = vmatpush.xpose.msra.mxu0 0.0
    %563 = vmatpush.xpose.msra.mxu0 0.0
    %564 = vmatpush.xpose.msra.mxu0 0.0
    %565 = vmatpush.xpose.msra.mxu0 0.0
    %566 = vmatpush.xpose.msra.mxu0 0.0
    %567 = vmatpush.xpose.msra.mxu0 0.0
    %568 = vmatpush.xpose.msra.mxu0 0.0
    %569 = vmatpush.xpose.msra.mxu0 0.0
    %570 = vmatpush.xpose.msra.mxu0 %v553
    %571 = vmatmul.f32.gmra.mxu0 %v550
    %v572 = vpop.f32.mrf.mxu0
    %v573 = vadd.f32 %v407, %v572
    %574 = vdwg.mxu0
    %v576 = vsel %vm418, %v166, 0
    %v579 = vsel %vm418, %v277, 0
    %581 = vmatpush.xpose.msra.mxu0 0.0
    %582 = vmatpush.xpose.msra.mxu0 0.0
    %583 = vmatpush.xpose.msra.mxu0 0.0
    %584 = vmatpush.xpose.msra.mxu0 0.0
    %585 = vmatpush.xpose.msra.mxu0 0.0
    %586 = vmatpush.xpose.msra.mxu0 0.0
    %587 = vmatpush.xpose.msra.mxu0 0.0
    %588 = vmatpush.xpose.msra.mxu0 0.0
    %589 = vmatpush.xpose.msra.mxu0 0.0
    %590 = vmatpush.xpose.msra.mxu0 0.0
    %591 = vmatpush.xpose.msra.mxu0 0.0
    %592 = vmatpush.xpose.msra.mxu0 0.0
    %593 = vmatpush.xpose.msra.mxu0 0.0
    %594 = vmatpush.xpose.msra.mxu0 0.0
    %595 = vmatpush.xpose.msra.mxu0 0.0
    %596 = vmatpush.xpose.msra.mxu0 %v579
    %597 = vmatmul.f32.gmra.mxu0 %v576
    %v598 = vpop.f32.mrf.mxu0
    %v599 = vadd.f32 %v408, %v598
    %600 = vdwg.mxu0
    %v602 = vsel %vm418, %v169, 0
    %v605 = vsel %vm418, %v280, 0
    %607 = vmatpush.xpose.msra.mxu0 0.0
    %608 = vmatpush.xpose.msra.mxu0 0.0
    %609 = vmatpush.xpose.msra.mxu0 0.0
    %610 = vmatpush.xpose.msra.mxu0 0.0
    %611 = vmatpush.xpose.msra.mxu0 0.0
    %612 = vmatpush.xpose.msra.mxu0 0.0
    %613 = vmatpush.xpose.msra.mxu0 0.0
    %614 = vmatpush.xpose.msra.mxu0 0.0
    %615 = vmatpush.xpose.msra.mxu0 0.0
    %616 = vmatpush.xpose.msra.mxu0 0.0
    %617 = vmatpush.xpose.msra.mxu0 0.0
    %618 = vmatpush.xpose.msra.mxu0 0.0
    %619 = vmatpush.xpose.msra.mxu0 0.0
    %620 = vmatpush.xpose.msra.mxu0 0.0
    %621 = vmatpush.xpose.msra.mxu0 0.0
    %622 = vmatpush.xpose.msra.mxu0 %v605
    %623 = vmatmul.f32.gmra.mxu0 %v602
    %v624 = vpop.f32.mrf.mxu0
    %v625 = vadd.f32 %v409, %v624
    %626 = vdwg.mxu0
    %v627 = vsel %vm418, %v443, -inf
    %628 = vmax.xlane.f32.xlu0 %v627
    %v629 = vpop.xlane.xlu0 %628
    %v630 = vsel %vm418, %v469, -inf
    %631 = vmax.xlane.f32.xlu0 %v630
    %v632 = vpop.xlane.xlu0 %631
    %v633 = vsel %vm418, %v495, -inf
    %634 = vmax.xlane.f32.xlu0 %v633
    %v635 = vpop.xlane.xlu0 %634
    %v636 = vsel %vm418, %v521, -inf
    %637 = vmax.xlane.f32.xlu0 %v636
    %v638 = vpop.xlane.xlu0 %637
    %v639 = vsel %vm418, %v547, -inf
    %640 = vmax.xlane.f32.xlu0 %v639
    %v641 = vpop.xlane.xlu0 %640
    %v642 = vsel %vm418, %v573, -inf
    %643 = vmax.xlane.f32.xlu0 %v642
    %v644 = vpop.xlane.xlu0 %643
    %v645 = vsel %vm418, %v599, -inf
    %646 = vmax.xlane.f32.xlu0 %v645
    %v647 = vpop.xlane.xlu0 %646
    %v648 = vsel %vm418, %v625, -inf
    %649 = vmax.xlane.f32.xlu0 %v648
    %v650 = vpop.xlane.xlu0 %649
    %v651 = vsub.f32 %v443, %v629
    %v652 = vsub.f32 %v469, %v632
    %v653 = vsub.f32 %v495, %v635
    %v654 = vsub.f32 %v521, %v638
    %v655 = vsub.f32 %v547, %v641
    %v656 = vsub.f32 %v573, %v644
    %v657 = vsub.f32 %v599, %v647
    %v658 = vsub.f32 %v625, %v650
    %v659 = vmul.f32 %v651, 1.442695
    %v660 = vpow.pop %v659
    %v661 = vmul.f32 %v652, 1.442695
    %v662 = vpow.pop %v661
    %v663 = vmul.f32 %v653, 1.442695
    %v664 = vpow.pop %v663
    %v665 = vmul.f32 %v654, 1.442695
    %v666 = vpow.pop %v665
    %v667 = vmul.f32 %v655, 1.442695
    %v668 = vpow.pop %v667
    %v669 = vmul.f32 %v656, 1.442695
    %v670 = vpow.pop %v669
    %v671 = vmul.f32 %v657, 1.442695
    %v672 = vpow.pop %v671
    %v673 = vmul.f32 %v658, 1.442695
    %v674 = vpow.pop %v673
    %v675 = vsel %vm418, %v660, 0.0
    %676 = vadd.xlane.f32.xlu0 %v675
    %v677 = vpop.xlane.xlu0 %676
    %v678 = vsel %vm418, %v662, 0.0
    %679 = vadd.xlane.f32.xlu0 %v678
    %v680 = vpop.xlane.xlu0 %679
    %v681 = vsel %vm418, %v664, 0.0
    %682 = vadd.xlane.f32.xlu0 %v681
    %v683 = vpop.xlane.xlu0 %682
    %v684 = vsel %vm418, %v666, 0.0
    %685 = vadd.xlane.f32.xlu0 %v684
    %v686 = vpop.xlane.xlu0 %685
    %v687 = vsel %vm418, %v668, 0.0
    %688 = vadd.xlane.f32.xlu0 %v687
    %v689 = vpop.xlane.xlu0 %688
    %v690 = vsel %vm418, %v670, 0.0
    %691 = vadd.xlane.f32.xlu0 %v690
    %v692 = vpop.xlane.xlu0 %691
    %v693 = vsel %vm418, %v672, 0.0
    %694 = vadd.xlane.f32.xlu0 %v693
    %v695 = vpop.xlane.xlu0 %694
    %v696 = vsel %vm418, %v674, 0.0
    %697 = vadd.xlane.f32.xlu0 %v696
    %v698 = vpop.xlane.xlu0 %697
    %v699 = vrcp.pop %v677
    %v700 = vmul.f32 %v677, %v699
    %v701 = vsub.f32 1.0, %v700
    %v702 = vmul.f32 %v699, %v701
    %v703 = vadd.f32 %v699, %v702
    %vm704 = vweird.f32 %v677
    %vm705 = vweird.f32 %v699
    %vm706 = vmor %vm704, %vm705
    %v707 = vsel %vm706, %v699, %v703
    %v708 = vand.u32 2147483647, %v677
    %vm709 = vcmp.eq.f32.partialorder %v708, 8.507059e+37
    %v710 = vand.u32 %v677, 2147483648
    %v711 = vor.u32 1.1754944e-38, %v710
    %v712 = vsel %vm709, %v711, %v707
    %v713 = vrcp.pop %v680
    %v714 = vmul.f32 %v680, %v713
    %v715 = vsub.f32 1.0, %v714
    %v716 = vmul.f32 %v713, %v715
    %v717 = vadd.f32 %v713, %v716
    %vm718 = vweird.f32 %v680
    %vm719 = vweird.f32 %v713
    %vm720 = vmor %vm718, %vm719
    %v721 = vsel %vm720, %v713, %v717
    %v722 = vand.u32 2147483647, %v680
    %vm723 = vcmp.eq.f32.partialorder %v722, 8.507059e+37
    %v724 = vand.u32 %v680, 2147483648
    %v725 = vor.u32 1.1754944e-38, %v724
    %v726 = vsel %vm723, %v725, %v721
    %v727 = vrcp.pop %v683
    %v728 = vmul.f32 %v683, %v727
    %v729 = vsub.f32 1.0, %v728
    %v730 = vmul.f32 %v727, %v729
    %v731 = vadd.f32 %v727, %v730
    %vm732 = vweird.f32 %v683
    %vm733 = vweird.f32 %v727
    %vm734 = vmor %vm732, %vm733
    %v735 = vsel %vm734, %v727, %v731
    %v736 = vand.u32 2147483647, %v683
    %vm737 = vcmp.eq.f32.partialorder %v736, 8.507059e+37
    %v738 = vand.u32 %v683, 2147483648
    %v739 = vor.u32 1.1754944e-38, %v738
    %v740 = vsel %vm737, %v739, %v735
    %v741 = vrcp.pop %v686
    %v742 = vmul.f32 %v686, %v741
    %v743 = vsub.f32 1.0, %v742
    %v744 = vmul.f32 %v741, %v743
    %v745 = vadd.f32 %v741, %v744
    %vm746 = vweird.f32 %v686
    %vm747 = vweird.f32 %v741
    %vm748 = vmor %vm746, %vm747
    %v749 = vsel %vm748, %v741, %v745
    %v750 = vand.u32 2147483647, %v686
    %vm751 = vcmp.eq.f32.partialorder %v750, 8.507059e+37
    %v752 = vand.u32 %v686, 2147483648
    %v753 = vor.u32 1.1754944e-38, %v752
    %v754 = vsel %vm751, %v753, %v749
    %v755 = vrcp.pop %v689
    %v756 = vmul.f32 %v689, %v755
    %v757 = vsub.f32 1.0, %v756
    %v758 = vmul.f32 %v755, %v757
    %v759 = vadd.f32 %v755, %v758
    %vm760 = vweird.f32 %v689
    %vm761 = vweird.f32 %v755
    %vm762 = vmor %vm760, %vm761
    %v763 = vsel %vm762, %v755, %v759
    %v764 = vand.u32 2147483647, %v689
    %vm765 = vcmp.eq.f32.partialorder %v764, 8.507059e+37
    %v766 = vand.u32 %v689, 2147483648
    %v767 = vor.u32 1.1754944e-38, %v766
    %v768 = vsel %vm765, %v767, %v763
    %v769 = vrcp.pop %v692
    %v770 = vmul.f32 %v692, %v769
    %v771 = vsub.f32 1.0, %v770
    %v772 = vmul.f32 %v769, %v771
    %v773 = vadd.f32 %v769, %v772
    %vm774 = vweird.f32 %v692
    %vm775 = vweird.f32 %v769
    %vm776 = vmor %vm774, %vm775
    %v777 = vsel %vm776, %v769, %v773
    %v778 = vand.u32 2147483647, %v692
    %vm779 = vcmp.eq.f32.partialorder %v778, 8.507059e+37
    %v780 = vand.u32 %v692, 2147483648
    %v781 = vor.u32 1.1754944e-38, %v780
    %v782 = vsel %vm779, %v781, %v777
    %v783 = vrcp.pop %v695
    %v784 = vmul.f32 %v695, %v783
    %v785 = vsub.f32 1.0, %v784
    %v786 = vmul.f32 %v783, %v785
    %v787 = vadd.f32 %v783, %v786
    %vm788 = vweird.f32 %v695
    %vm789 = vweird.f32 %v783
    %vm790 = vmor %vm788, %vm789
    %v791 = vsel %vm790, %v783, %v787
    %v792 = vand.u32 2147483647, %v695
    %vm793 = vcmp.eq.f32.partialorder %v792, 8.507059e+37
    %v794 = vand.u32 %v695, 2147483648
    %v795 = vor.u32 1.1754944e-38, %v794
    %v796 = vsel %vm793, %v795, %v791
    %v797 = vrcp.pop %v698
    %v798 = vmul.f32 %v698, %v797
    %v799 = vsub.f32 1.0, %v798
    %v800 = vmul.f32 %v797, %v799
    %v801 = vadd.f32 %v797, %v800
    %vm802 = vweird.f32 %v698
    %vm803 = vweird.f32 %v797
    %vm804 = vmor %vm802, %vm803
    %v805 = vsel %vm804, %v797, %v801
    %v806 = vand.u32 2147483647, %v698
    %vm807 = vcmp.eq.f32.partialorder %v806, 8.507059e+37
    %v808 = vand.u32 %v698, 2147483648
    %v809 = vor.u32 1.1754944e-38, %v808
    %v810 = vsel %vm807, %v809, %v805
    %v811 = vmul.f32 %v660, %v712
    %v812 = vmul.f32 %v662, %v726
    %v813 = vmul.f32 %v664, %v740
    %v814 = vmul.f32 %v666, %v754
    %v815 = vmul.f32 %v668, %v768
    %v816 = vmul.f32 %v670, %v782
    %v817 = vmul.f32 %v672, %v796
    %v818 = vmul.f32 %v674, %v810
    %v820 = vsel %vm418, %v811, 0
    %822 = vmatpush.msra.mxu0 0.0
    %823 = vmatpush.msra.mxu0 0.0
    %824 = vmatpush.msra.mxu0 0.0
    %825 = vmatpush.msra.mxu0 0.0
    %826 = vmatpush.msra.mxu0 0.0
    %827 = vmatpush.msra.mxu0 0.0
    %828 = vmatpush.msra.mxu0 0.0
    %829 = vmatpush.msra.mxu0 0.0
    %830 = vmatpush.msra.mxu0 0.0
    %831 = vmatpush.msra.mxu0 0.0
    %832 = vmatpush.msra.mxu0 0.0
    %833 = vmatpush.msra.mxu0 0.0
    %834 = vmatpush.msra.mxu0 0.0
    %835 = vmatpush.msra.mxu0 0.0
    %836 = vmatpush.msra.mxu0 0.0
    %837 = vmatpush.msra.mxu0 %v304
    %838 = vmatmul.f32.gmra.mxu0 %v820
    %v839 = vpop.f32.mrf.mxu0
    %v840 = vadd.f32 0.0, %v839
    %841 = vdwg.mxu0
    %v843 = vsel %vm418, %v812, 0
    %845 = vmatpush.msra.mxu0 0.0
    %846 = vmatpush.msra.mxu0 0.0
    %847 = vmatpush.msra.mxu0 0.0
    %848 = vmatpush.msra.mxu0 0.0
    %849 = vmatpush.msra.mxu0 0.0
    %850 = vmatpush.msra.mxu0 0.0
    %851 = vmatpush.msra.mxu0 0.0
    %852 = vmatpush.msra.mxu0 0.0
    %853 = vmatpush.msra.mxu0 0.0
    %854 = vmatpush.msra.mxu0 0.0
    %855 = vmatpush.msra.mxu0 0.0
    %856 = vmatpush.msra.mxu0 0.0
    %857 = vmatpush.msra.mxu0 0.0
    %858 = vmatpush.msra.mxu0 0.0
    %859 = vmatpush.msra.mxu0 0.0
    %860 = vmatpush.msra.mxu0 %v307
    %861 = vmatmul.f32.gmra.mxu0 %v843
    %v862 = vpop.f32.mrf.mxu0
    %v863 = vadd.f32 0.0, %v862
    %864 = vdwg.mxu0
    %v866 = vsel %vm418, %v813, 0
    %868 = vmatpush.msra.mxu0 0.0
    %869 = vmatpush.msra.mxu0 0.0
    %870 = vmatpush.msra.mxu0 0.0
    %871 = vmatpush.msra.mxu0 0.0
    %872 = vmatpush.msra.mxu0 0.0
    %873 = vmatpush.msra.mxu0 0.0
    %874 = vmatpush.msra.mxu0 0.0
    %875 = vmatpush.msra.mxu0 0.0
    %876 = vmatpush.msra.mxu0 0.0
    %877 = vmatpush.msra.mxu0 0.0
    %878 = vmatpush.msra.mxu0 0.0
    %879 = vmatpush.msra.mxu0 0.0
    %880 = vmatpush.msra.mxu0 0.0
    %881 = vmatpush.msra.mxu0 0.0
    %882 = vmatpush.msra.mxu0 0.0
    %883 = vmatpush.msra.mxu0 %v332
    %884 = vmatmul.f32.gmra.mxu0 %v866
    %v885 = vpop.f32.mrf.mxu0
    %v886 = vadd.f32 0.0, %v885
    %887 = vdwg.mxu0
    %v889 = vsel %vm418, %v814, 0
    %891 = vmatpush.msra.mxu0 0.0
    %892 = vmatpush.msra.mxu0 0.0
    %893 = vmatpush.msra.mxu0 0.0
    %894 = vmatpush.msra.mxu0 0.0
    %895 = vmatpush.msra.mxu0 0.0
    %896 = vmatpush.msra.mxu0 0.0
    %897 = vmatpush.msra.mxu0 0.0
    %898 = vmatpush.msra.mxu0 0.0
    %899 = vmatpush.msra.mxu0 0.0
    %900 = vmatpush.msra.mxu0 0.0
    %901 = vmatpush.msra.mxu0 0.0
    %902 = vmatpush.msra.mxu0 0.0
    %903 = vmatpush.msra.mxu0 0.0
    %904 = vmatpush.msra.mxu0 0.0
    %905 = vmatpush.msra.mxu0 0.0
    %906 = vmatpush.msra.mxu0 %v335
    %907 = vmatmul.f32.gmra.mxu0 %v889
    %v908 = vpop.f32.mrf.mxu0
    %v909 = vadd.f32 0.0, %v908
    %910 = vdwg.mxu0
    %v912 = vsel %vm418, %v815, 0
    %914 = vmatpush.msra.mxu0 0.0
    %915 = vmatpush.msra.mxu0 0.0
    %916 = vmatpush.msra.mxu0 0.0
    %917 = vmatpush.msra.mxu0 0.0
    %918 = vmatpush.msra.mxu0 0.0
    %919 = vmatpush.msra.mxu0 0.0
    %920 = vmatpush.msra.mxu0 0.0
    %921 = vmatpush.msra.mxu0 0.0
    %922 = vmatpush.msra.mxu0 0.0
    %923 = vmatpush.msra.mxu0 0.0
    %924 = vmatpush.msra.mxu0 0.0
    %925 = vmatpush.msra.mxu0 0.0
    %926 = vmatpush.msra.mxu0 0.0
    %927 = vmatpush.msra.mxu0 0.0
    %928 = vmatpush.msra.mxu0 0.0
    %929 = vmatpush.msra.mxu0 %v360
    %930 = vmatmul.f32.gmra.mxu0 %v912
    %v931 = vpop.f32.mrf.mxu0
    %v932 = vadd.f32 0.0, %v931
    %933 = vdwg.mxu0
    %v935 = vsel %vm418, %v816, 0
    %937 = vmatpush.msra.mxu0 0.0
    %938 = vmatpush.msra.mxu0 0.0
    %939 = vmatpush.msra.mxu0 0.0
    %940 = vmatpush.msra.mxu0 0.0
    %941 = vmatpush.msra.mxu0 0.0
    %942 = vmatpush.msra.mxu0 0.0
    %943 = vmatpush.msra.mxu0 0.0
    %944 = vmatpush.msra.mxu0 0.0
    %945 = vmatpush.msra.mxu0 0.0
    %946 = vmatpush.msra.mxu0 0.0
    %947 = vmatpush.msra.mxu0 0.0
    %948 = vmatpush.msra.mxu0 0.0
    %949 = vmatpush.msra.mxu0 0.0
    %950 = vmatpush.msra.mxu0 0.0
    %951 = vmatpush.msra.mxu0 0.0
    %952 = vmatpush.msra.mxu0 %v363
    %953 = vmatmul.f32.gmra.mxu0 %v935
    %v954 = vpop.f32.mrf.mxu0
    %v955 = vadd.f32 0.0, %v954
    %956 = vdwg.mxu0
    %v958 = vsel %vm418, %v817, 0
    %960 = vmatpush.msra.mxu0 0.0
    %961 = vmatpush.msra.mxu0 0.0
    %962 = vmatpush.msra.mxu0 0.0
    %963 = vmatpush.msra.mxu0 0.0
    %964 = vmatpush.msra.mxu0 0.0
    %965 = vmatpush.msra.mxu0 0.0
    %966 = vmatpush.msra.mxu0 0.0
    %967 = vmatpush.msra.mxu0 0.0
    %968 = vmatpush.msra.mxu0 0.0
    %969 = vmatpush.msra.mxu0 0.0
    %970 = vmatpush.msra.mxu0 0.0
    %971 = vmatpush.msra.mxu0 0.0
    %972 = vmatpush.msra.mxu0 0.0
    %973 = vmatpush.msra.mxu0 0.0
    %974 = vmatpush.msra.mxu0 0.0
    %975 = vmatpush.msra.mxu0 %v388
    %976 = vmatmul.f32.gmra.mxu0 %v958
    %v977 = vpop.f32.mrf.mxu0
    %v978 = vadd.f32 0.0, %v977
    %979 = vdwg.mxu0
    %v981 = vsel %vm418, %v818, 0
    %983 = vmatpush.msra.mxu0 0.0
    %984 = vmatpush.msra.mxu0 0.0
    %985 = vmatpush.msra.mxu0 0.0
    %986 = vmatpush.msra.mxu0 0.0
    %987 = vmatpush.msra.mxu0 0.0
    %988 = vmatpush.msra.mxu0 0.0
    %989 = vmatpush.msra.mxu0 0.0
    %990 = vmatpush.msra.mxu0 0.0
    %991 = vmatpush.msra.mxu0 0.0
    %992 = vmatpush.msra.mxu0 0.0
    %993 = vmatpush.msra.mxu0 0.0
    %994 = vmatpush.msra.mxu0 0.0
    %995 = vmatpush.msra.mxu0 0.0
    %996 = vmatpush.msra.mxu0 0.0
    %997 = vmatpush.msra.mxu0 0.0
    %998 = vmatpush.msra.mxu0 %v391
    %999 = vmatmul.f32.gmra.mxu0 %v981
    %v1000 = vpop.f32.mrf.mxu0
    %v1001 = vadd.f32 0.0, %v1000
    %1002 = vdwg.mxu0
    %v1003 = vld [vmem:[%s6] sm:$0x1]
    %v1004 = vld [vmem:[%s5] sm:$0xff]
    %v1006 = vsel %vm418, %v840, 0
    %v1009 = vsel %vm418, %v863, 0
    %1011 = vmatpush.msra.mxu0 0.0
    %1012 = vmatpush.msra.mxu0 0.0
    %1013 = vmatpush.msra.mxu0 0.0
    %1014 = vmatpush.msra.mxu0 0.0
    %1015 = vmatpush.msra.mxu0 0.0
    %1016 = vmatpush.msra.mxu0 0.0
    %1017 = vmatpush.msra.mxu0 0.0
    %1018 = vmatpush.msra.mxu0 0.0
    %1019 = vmatpush.msra.mxu0 0.0
    %1020 = vmatpush.msra.mxu0 0.0
    %1021 = vmatpush.msra.mxu0 0.0
    %1022 = vmatpush.msra.mxu0 0.0
    %1023 = vmatpush.msra.mxu0 0.0
    %1024 = vmatpush.msra.mxu0 0.0
    %1025 = vmatpush.msra.mxu0 0.0
    %1026 = vmatpush.msra.mxu0 %v1004
    %1027 = vmatmul.f32.gmra.mxu0 %v1006
    %v1028 = vpop.f32.mrf.mxu0
    %v1029 = vadd.f32 0.0, %v1028
    %1030 = vmatmul.f32.gmra.mxu0 %v1009
    %v1031 = vpop.f32.mrf.mxu0
    %v1032 = vadd.f32 0.0, %v1031
    %1033 = vdwg.mxu0
    %v1035 = vperm.slane %v1003, 0
    %v1037 = vadd.f32 %v1035, %v1029
    %v1038 = vadd.f32 %v1035, %v1032
    %s1039 = scalar_lea.vmem %s5, 8
    %v1040 = vld [vmem:[%s1039] sm:$0xff]
    %v1042 = vsel %vm418, %v886, 0
    %v1045 = vsel %vm418, %v909, 0
    %1047 = vmatpush.msra.mxu0 0.0
    %1048 = vmatpush.msra.mxu0 0.0
    %1049 = vmatpush.msra.mxu0 0.0
    %1050 = vmatpush.msra.mxu0 0.0
    %1051 = vmatpush.msra.mxu0 0.0
    %1052 = vmatpush.msra.mxu0 0.0
    %1053 = vmatpush.msra.mxu0 0.0
    %1054 = vmatpush.msra.mxu0 0.0
    %1055 = vmatpush.msra.mxu0 0.0
    %1056 = vmatpush.msra.mxu0 0.0
    %1057 = vmatpush.msra.mxu0 0.0
    %1058 = vmatpush.msra.mxu0 0.0
    %1059 = vmatpush.msra.mxu0 0.0
    %1060 = vmatpush.msra.mxu0 0.0
    %1061 = vmatpush.msra.mxu0 0.0
    %1062 = vmatpush.msra.mxu0 %v1040
    %1063 = vmatmul.f32.gmra.mxu0 %v1042
    %v1064 = vpop.f32.mrf.mxu0
    %v1065 = vadd.f32 0.0, %v1064
    %1066 = vmatmul.f32.gmra.mxu0 %v1045
    %v1067 = vpop.f32.mrf.mxu0
    %v1068 = vadd.f32 0.0, %v1067
    %1069 = vdwg.mxu0
    %v1070 = vadd.f32 %v1037, %v1065
    %v1071 = vadd.f32 %v1038, %v1068
    %s1072 = scalar_lea.vmem %s5, 16
    %v1073 = vld [vmem:[%s1072] sm:$0xff]
    %v1075 = vsel %vm418, %v932, 0
    %v1078 = vsel %vm418, %v955, 0
    %1080 = vmatpush.msra.mxu0 0.0
    %1081 = vmatpush.msra.mxu0 0.0
    %1082 = vmatpush.msra.mxu0 0.0
    %1083 = vmatpush.msra.mxu0 0.0
    %1084 = vmatpush.msra.mxu0 0.0
    %1085 = vmatpush.msra.mxu0 0.0
    %1086 = vmatpush.msra.mxu0 0.0
    %1087 = vmatpush.msra.mxu0 0.0
    %1088 = vmatpush.msra.mxu0 0.0
    %1089 = vmatpush.msra.mxu0 0.0
    %1090 = vmatpush.msra.mxu0 0.0
    %1091 = vmatpush.msra.mxu0 0.0
    %1092 = vmatpush.msra.mxu0 0.0
    %1093 = vmatpush.msra.mxu0 0.0
    %1094 = vmatpush.msra.mxu0 0.0
    %1095 = vmatpush.msra.mxu0 %v1073
    %1096 = vmatmul.f32.gmra.mxu0 %v1075
    %v1097 = vpop.f32.mrf.mxu0
    %v1098 = vadd.f32 0.0, %v1097
    %1099 = vmatmul.f32.gmra.mxu0 %v1078
    %v1100 = vpop.f32.mrf.mxu0
    %v1101 = vadd.f32 0.0, %v1100
    %1102 = vdwg.mxu0
    %v1103 = vadd.f32 %v1070, %v1098
    %v1104 = vadd.f32 %v1071, %v1101
    %s1105 = scalar_lea.vmem %s5, 24
    %v1106 = vld [vmem:[%s1105] sm:$0xff]
    %v1108 = vsel %vm418, %v978, 0
    %v1111 = vsel %vm418, %v1001, 0
    %1113 = vmatpush.msra.mxu0 0.0
    %1114 = vmatpush.msra.mxu0 0.0
    %1115 = vmatpush.msra.mxu0 0.0
    %1116 = vmatpush.msra.mxu0 0.0
    %1117 = vmatpush.msra.mxu0 0.0
    %1118 = vmatpush.msra.mxu0 0.0
    %1119 = vmatpush.msra.mxu0 0.0
    %1120 = vmatpush.msra.mxu0 0.0
    %1121 = vmatpush.msra.mxu0 0.0
    %1122 = vmatpush.msra.mxu0 0.0
    %1123 = vmatpush.msra.mxu0 0.0
    %1124 = vmatpush.msra.mxu0 0.0
    %1125 = vmatpush.msra.mxu0 0.0
    %1126 = vmatpush.msra.mxu0 0.0
    %1127 = vmatpush.msra.mxu0 0.0
    %1128 = vmatpush.msra.mxu0 %v1106
    %1129 = vmatmul.f32.gmra.mxu0 %v1108
    %v1130 = vpop.f32.mrf.mxu0
    %v1131 = vadd.f32 0.0, %v1130
    %1132 = vmatmul.f32.gmra.mxu0 %v1111
    %v1133 = vpop.f32.mrf.mxu0
    %v1134 = vadd.f32 0.0, %v1133
    %1135 = vdwg.mxu0
    %v1136 = vadd.f32 %v1103, %v1131
    %v1137 = vadd.f32 %v1104, %v1134
    %v1138 = vadd.f32 %v1136, %v51
    %v1139 = vadd.f32 %v1137, %v52
    %v1140 = vld [vmem:[%s7] sm:$0x1]
    %v1141 = vld [vmem:[%s8] sm:$0x1]
    %v1142 = vsel %vm57, %v1138, 0.0
    %1143 = vadd.xlane.f32.xlu0 %v1142
    %v1144 = vpop.xlane.xlu0 %1143
    %v1145 = vsel %vm57, %v1139, 0.0
    %1146 = vadd.xlane.f32.xlu0 %v1145
    %v1147 = vpop.xlane.xlu0 %1146
    %v1148 = vrcp.pop 32.0
    %v1149 = vmul.f32 32.0, %v1148
    %v1150 = vsub.f32 1.0, %v1149
    %v1151 = vmul.f32 %v1148, %v1150
    %v1152 = vadd.f32 %v1148, %v1151
    %vm1153 = vweird.f32 %v1148
    %v1154 = vsel %vm1153, %v1148, %v1152
    %v1155 = vmul.f32 %v1144, %v1154
    %v1156 = vmul.f32 %v1147, %v1154
    %v1157 = vsub.f32 %v1138, %v1155
    %v1158 = vsub.f32 %v1139, %v1156
    %v1159 = vmul.f32 %v1157, %v1157
    %v1160 = vmul.f32 %v1158, %v1158
    %v1161 = vsel %vm57, %v1159, 0.0
    %1162 = vadd.xlane.f32.xlu0 %v1161
    %v1163 = vpop.xlane.xlu0 %1162
    %v1164 = vsel %vm57, %v1160, 0.0
    %1165 = vadd.xlane.f32.xlu0 %v1164
    %v1166 = vpop.xlane.xlu0 %1165
    %v1167 = vmul.f32 %v1163, %v1154
    %v1168 = vmul.f32 %v1166, %v1154
    %v1169 = vadd.f32 %v1167, 1e-05
    %v1170 = vadd.f32 %v1168, 1e-05
    %v1171 = vrsqrt.pop %v1169
    %v1172 = vmul.f32 %v1171, %v1169
    %v1173 = vmul.f32 %v1172, %v1171
    %v1174 = vmul.f32 0.5, %v1173
    %v1175 = vsub.f32 1.5, %v1174
    %v1176 = vmul.f32 %v1171, %v1175
    %vm1177 = vweird.f32 %v1169
    %vm1178 = vweird.f32 %v1171
    %vm1179 = vmor %vm1177, %vm1178
    %v1180 = vsel %vm1179, %v1171, %v1176
    %v1181 = vrsqrt.pop %v1170
    %v1182 = vmul.f32 %v1181, %v1170
    %v1183 = vmul.f32 %v1182, %v1181
    %v1184 = vmul.f32 0.5, %v1183
    %v1185 = vsub.f32 1.5, %v1184
    %v1186 = vmul.f32 %v1181, %v1185
    %vm1187 = vweird.f32 %v1170
    %vm1188 = vweird.f32 %v1181
    %vm1189 = vmor %vm1187, %vm1188
    %v1190 = vsel %vm1189, %v1181, %v1186
    %v1191 = vmul.f32 %v1157, %v1180
    %v1192 = vmul.f32 %v1158, %v1190
    %v1194 = vperm.slane %v1140, 0
    %v1196 = vmul.f32 %v1191, %v1194
    %v1197 = vmul.f32 %v1192, %v1194
    %v1199 = vperm.slane %v1141, 0
    %v1201 = vadd.f32 %v1196, %v1199
    %v1202 = vadd.f32 %v1197, %v1199
    %v1203 = vld [vmem:[%s9] sm:$0xff]
    %v1204 = vld [vmem:[%s9 + $0x8] sm:$0xff]
    %v1205 = vld [vmem:[%s9 + $0x10] sm:$0xff]
    %v1206 = vld [vmem:[%s9 + $0x18] sm:$0xff]
    %v1207 = vld [vmem:[%s10] sm:$0x1]
    %v1209 = vperm.slane %v1207, 0
    %v1212 = vsel %vm57, %v1201, 0
    %v1215 = vsel %vm57, %v1202, 0
    %1217 = vmatpush.msra.mxu0 0.0
    %1218 = vmatpush.msra.mxu0 0.0
    %1219 = vmatpush.msra.mxu0 0.0
    %1220 = vmatpush.msra.mxu0 0.0
    %1221 = vmatpush.msra.mxu0 0.0
    %1222 = vmatpush.msra.mxu0 0.0
    %1223 = vmatpush.msra.mxu0 0.0
    %1224 = vmatpush.msra.mxu0 0.0
    %1225 = vmatpush.msra.mxu0 0.0
    %1226 = vmatpush.msra.mxu0 0.0
    %1227 = vmatpush.msra.mxu0 0.0
    %1228 = vmatpush.msra.mxu0 0.0
    %1229 = vmatpush.msra.mxu0 %v1206
    %1230 = vmatpush.msra.mxu0 %v1205
    %1231 = vmatpush.msra.mxu0 %v1204
    %1232 = vmatpush.msra.mxu0 %v1203
    %1233 = vmatmul.f32.gmra.mxu0 %v1212
    %v1234 = vpop.f32.mrf.mxu0
    %v1235 = vadd.f32 %v1209, %v1234
    %1236 = vmatmul.f32.gmra.mxu0 %v1215
    %v1237 = vpop.f32.mrf.mxu0
    %v1238 = vadd.f32 %v1209, %v1237
    %1239 = vdwg.mxu0
    %v1240 = vmax.f32 %v1235, 0.0
    %v1241 = vmax.f32 %v1238, 0.0
    %v1242 = vld [vmem:[%s11] sm:$0xff]
    %v1243 = vld [vmem:[%s11 + $0x8] sm:$0xff]
    %v1244 = vld [vmem:[%s11 + $0x10] sm:$0xff]
    %v1245 = vld [vmem:[%s11 + $0x18] sm:$0xff]
    %v1246 = vld [vmem:[%s11 + $0x20] sm:$0xff]
    %v1247 = vld [vmem:[%s11 + $0x28] sm:$0xff]
    %v1248 = vld [vmem:[%s11 + $0x30] sm:$0xff]
    %v1249 = vld [vmem:[%s11 + $0x38] sm:$0xff]
    %v1250 = vld [vmem:[%s11 + $0x40] sm:$0xff]
    %v1251 = vld [vmem:[%s11 + $0x48] sm:$0xff]
    %v1252 = vld [vmem:[%s11 + $0x50] sm:$0xff]
    %v1253 = vld [vmem:[%s11 + $0x58] sm:$0xff]
    %v1254 = vld [vmem:[%s11 + $0x60] sm:$0xff]
    %v1255 = vld [vmem:[%s11 + $0x68] sm:$0xff]
    %v1256 = vld [vmem:[%s11 + $0x70] sm:$0xff]
    %v1257 = vld [vmem:[%s11 + $0x78] sm:$0xff]
    %v1258 = vld [vmem:[%s12] sm:$0x1]
    %v1260 = vperm.slane %v1258, 0
    %1262 = vmatpush.msra.mxu0 %v1257
    %1263 = vmatpush.msra.mxu0 %v1256
    %1264 = vmatpush.msra.mxu0 %v1255
    %1265 = vmatpush.msra.mxu0 %v1254
    %1266 = vmatpush.msra.mxu0 %v1253
    %1267 = vmatpush.msra.mxu0 %v1252
    %1268 = vmatpush.msra.mxu0 %v1251
    %1269 = vmatpush.msra.mxu0 %v1250
    %1270 = vmatpush.msra.mxu0 %v1249
    %1271 = vmatpush.msra.mxu0 %v1248
    %1272 = vmatpush.msra.mxu0 %v1247
    %1273 = vmatpush.msra.mxu0 %v1246
    %1274 = vmatpush.msra.mxu0 %v1245
    %1275 = vmatpush.msra.mxu0 %v1244
    %1276 = vmatpush.msra.mxu0 %v1243
    %1277 = vmatpush.msra.mxu0 %v1242
    %1278 = vmatmul.f32.gmra.mxu0 %v1240
    %v1279 = vpop.f32.mrf.mxu0
    %v1280 = vadd.f32 %v1260, %v1279
    %1281 = vmatmul.f32.gmra.mxu0 %v1241
    %v1282 = vpop.f32.mrf.mxu0
    %v1283 = vadd.f32 %v1260, %v1282
    %1284 = vdwg.mxu0
    %v1285 = vadd.f32 %v1280, %v1201
    %v1286 = vadd.f32 %v1283, %v1202
    %v1287 = vld [vmem:[%s13] sm:$0x1]
    %v1288 = vld [vmem:[%s14] sm:$0x1]
    %v1289 = vsel %vm57, %v1285, 0.0
    %1290 = vadd.xlane.f32.xlu0 %v1289
    %v1291 = vpop.xlane.xlu0 %1290
    %v1292 = vsel %vm57, %v1286, 0.0
    %1293 = vadd.xlane.f32.xlu0 %v1292
    %v1294 = vpop.xlane.xlu0 %1293
    %v1295 = vmul.f32 %v1291, %v1154
    %v1296 = vmul.f32 %v1294, %v1154
    %v1297 = vsub.f32 %v1285, %v1295
    %v1298 = vsub.f32 %v1286, %v1296
    %v1299 = vmul.f32 %v1297, %v1297
    %v1300 = vmul.f32 %v1298, %v1298
    %v1301 = vsel %vm57, %v1299, 0.0
    %1302 = vadd.xlane.f32.xlu0 %v1301
    %v1303 = vpop.xlane.xlu0 %1302
    %v1304 = vsel %vm57, %v1300, 0.0
    %1305 = vadd.xlane.f32.xlu0 %v1304
    %v1306 = vpop.xlane.xlu0 %1305
    %v1307 = vmul.f32 %v1303, %v1154
    %v1308 = vmul.f32 %v1306, %v1154
    %v1309 = vadd.f32 %v1307, 1e-05
    %v1310 = vadd.f32 %v1308, 1e-05
    %v1311 = vrsqrt.pop %v1309
    %v1312 = vmul.f32 %v1311, %v1309
    %v1313 = vmul.f32 %v1312, %v1311
    %v1314 = vmul.f32 0.5, %v1313
    %v1315 = vsub.f32 1.5, %v1314
    %v1316 = vmul.f32 %v1311, %v1315
    %vm1317 = vweird.f32 %v1309
    %vm1318 = vweird.f32 %v1311
    %vm1319 = vmor %vm1317, %vm1318
    %v1320 = vsel %vm1319, %v1311, %v1316
    %v1321 = vrsqrt.pop %v1310
    %v1322 = vmul.f32 %v1321, %v1310
    %v1323 = vmul.f32 %v1322, %v1321
    %v1324 = vmul.f32 0.5, %v1323
    %v1325 = vsub.f32 1.5, %v1324
    %v1326 = vmul.f32 %v1321, %v1325
    %vm1327 = vweird.f32 %v1310
    %vm1328 = vweird.f32 %v1321
    %vm1329 = vmor %vm1327, %vm1328
    %v1330 = vsel %vm1329, %v1321, %v1326
    %v1331 = vmul.f32 %v1297, %v1320
    %v1332 = vmul.f32 %v1298, %v1330
    %v1334 = vperm.slane %v1287, 0
    %v1336 = vmul.f32 %v1331, %v1334
    %v1337 = vmul.f32 %v1332, %v1334
    %v1339 = vperm.slane %v1288, 0
    %v1341 = vadd.f32 %v1336, %v1339
    %v1342 = vadd.f32 %v1337, %v1339
    %1343 = vst.msk [vmem:[#allocation2] sm:$0xff] %vm57, %v1341
    %1344 = vst.msk [vmem:[#allocation2 + $0x8] sm:$0xff] %vm57, %v1342
    // Predicated region
    $region62: #{encoder_forward.1} parent=1 // pred_check
      _
    $region63: #{encoder_forward.1} parent=1 // pred_check_branch
      %1346 = sbr.rel (0) target = $region65
    $region64: #{encoder_forward.1} parent=1 // pred_region
      %1348 = vsyncadd [#allocation3], 0
      %s1349 = sshll.u32 [#allocation2], 4
      %s1350 = int_to_ptr.vmem [resolvable:$true] %s1349
      %s1351 = sshll.u32 %s15, 4
      %s1352 = int_to_ptr.hbm [resolvable:$true] %s1351
      %1357 = dma.vmem_to_hbm [thread:$0]  %s1350, 256, %s1352, [#allocation3], 128, 128, 8
    $region65: #{encoder_forward.1} parent=1 // pred_fallthru
      _
    // Predicated region
    $region66: #{encoder_forward.1} parent=1 // pred_check
      _
    $region67: #{encoder_forward.1} parent=1 // pred_check_branch
      %1359 = sbr.rel (0) target = $region69
    $region68: #{encoder_forward.1} parent=1 // pred_region
      %1361 = dma.done [#allocation3], 256
    $region69: #{encoder_forward.1} parent=1 // pred_fallthru
      _
    %1362 = vsyncpa [#allocation3], 1

</llo_original>
